<compile_context>
chip_gen: v6e
topology: v6e:2x2x1
jax: 0.10.0
libtpu: 0.0.40
codegen_flags: <defaults>
</compile_context>

<pallas_src>
import functools

import jax
import jax.numpy as jnp
from jax.experimental import pallas as pl
from jax.experimental.pallas import tpu as pltpu


def _round_up(x: int, m: int) -> int:
    return (x + m - 1) // m * m


def _cdiv(a: int, b: int) -> int:
    return (a + b - 1) // b


def _pad2(a, rows: int, cols: int):
    return jnp.pad(a, ((0, rows - a.shape[0]), (0, cols - a.shape[1])))


def _mlp_kernel(x_ref,
                w1_ref, b1_ref,
                w2_ref, b2_ref,
                w3_ref, b3_ref,
                w4_ref, b4_ref,
                o_ref):
    # One batch tile (tm rows). Weights/biases are VMEM-resident (constant
    # index_map), so the whole 4-layer MLP is fused per grid step. x arrives
    # as f32 and is cast to bf16 here (VPU work hidden under MXU/DMA) instead
    # of in a separate wrapper-side XLA pass.
    h = x_ref[...].astype(jnp.bfloat16)

    h = jnp.dot(h, w1_ref[...], preferred_element_type=jnp.float32) + b1_ref[...]
    h = jnp.maximum(h, 0.0).astype(jnp.bfloat16)

    h = jnp.dot(h, w2_ref[...], preferred_element_type=jnp.float32) + b2_ref[...]
    h = jnp.maximum(h, 0.0).astype(jnp.bfloat16)

    h = jnp.dot(h, w3_ref[...], preferred_element_type=jnp.float32) + b3_ref[...]
    h = jnp.maximum(h, 0.0).astype(jnp.bfloat16)

    logits = jnp.dot(h, w4_ref[...], preferred_element_type=jnp.float32) + b4_ref[...]
    o_ref[...] = logits.astype(o_ref.dtype)


def prepare_params(params):
    """Cast + pad the Linear weights/biases ONCE (outside the jitted forward).

    Weights -> bf16, zero-padded so every feature dim is a multiple of 128
    (lane-dense, full MXU columns). Biases stay f32. Zero padding is exact for
    Linear+ReLU (padded weight rows/cols are zero, ReLU(0)=0) and the padded
    output columns are sliced off after the kernel.
    """
    dims = [params["w1"].shape[0]] + [params[f"w{i}"].shape[1] for i in range(1, 5)]
    pdims = [_round_up(d, 128) for d in dims]
    prepared = {}
    for i in range(1, 5):
        prepared[f"w{i}"] = _pad2(params[f"w{i}"].astype(jnp.bfloat16),
                                  pdims[i - 1], pdims[i])
        prepared[f"b{i}"] = _pad2(params[f"b{i}"].astype(jnp.float32), 1, pdims[i])
    return prepared


def _pick_tm(batch: int, tm: int | None) -> int:
    """Batch tile: multiple of 8 sublanes. Default targets 256-512 rows so each
    grid step amortizes the ~0.35us per-step pipeline overhead, with >=2 grid
    steps when the batch is large enough (v7x: both TensorCores get work)."""
    if tm is not None:
        return max(8, _round_up(tm, 8))
    cap = 512
    bp8 = _round_up(max(batch, 8), 8)
    if bp8 >= 2 * 256:
        n_steps = max(2, _cdiv(bp8, cap))
        return min(cap, _round_up(_cdiv(bp8, n_steps), 8))
    return min(cap, bp8)


@functools.partial(jax.jit,
                   static_argnames=("num_classes", "tm", "single_buffer_weights"))
def _forward(x, prepared, *, num_classes: int, tm: int, single_buffer_weights: bool):
    B = x.shape[0]
    x_flat = x.reshape(B, -1)                      # nn.Flatten()
    in_dim = x_flat.shape[1]

    w1, w2, w3, w4 = (prepared[f"w{i}"] for i in range(1, 5))
    b1, b2, b3, b4 = (prepared[f"b{i}"] for i in range(1, 5))
    D0, D1 = w1.shape
    D2, D3, D4 = w2.shape[1], w3.shape[1], w4.shape[1]
    if D0 != _round_up(in_dim, 128):
        raise ValueError("prepared params do not match the flattened input dim")

    Bp = _round_up(B, tm)
    grid = (Bp // tm,)

    # x stays f32 (cast to bf16 inside the kernel). Padding is only for block
    # divisibility (a no-op when B % tm == 0 and in_dim % 128 == 0).
    xp = _pad2(x_flat.astype(jnp.float32), Bp, D0)

    # NOTE: for very large flattened inputs (when D0*(tm + D1) bytes approaches
    # the VMEM budget, e.g. 224x224x3 images) layer 1 should be K-tiled with a
    # second "arbitrary" grid axis and an f32 accumulator scratch; layers 2-4
    # stay fused. Not needed at MNIST/CIFAR sizes handled here.

    w_bytes = (D0 * D1 + D1 * D2 + D2 * D3 + D3 * D4) * 2
    b_bytes = (D1 + D2 + D3 + D4) * 4
    flops = 2 * Bp * (D0 * D1 + D1 * D2 + D2 * D3 + D3 * D4)
    bytes_accessed = Bp * D0 * 4 + w_bytes + b_bytes + Bp * D4 * 4

    # VMEM budget: double-buffered x/out tiles, single- (or double-) buffered
    # resident weights, plus headroom for intermediate activations.
    wfac = 1 if single_buffer_weights else 2
    vmem_needed = (2 * (tm * D0 * 4 + tm * D4 * 4)
                   + wfac * (w_bytes + b_bytes)
                   + 2 * tm * max(D1, D2, D3, D4) * 4)
    vmem_limit = min(max(int(1.5 * vmem_needed), 32 * 1024 * 1024),
                     64 * 1024 * 1024)

    const = lambda i: (0, 0)   # weights/biases: same block every grid step
    if single_buffer_weights:
        # Constant blocks never change -> one buffer is enough.
        wspec = lambda shape: pl.BlockSpec(shape, const,
                                           pipeline_mode=pl.Buffered(1))
    else:
        wspec = lambda shape: pl.BlockSpec(shape, const)

    out = pl.pallas_call(
        _mlp_kernel,
        out_shape=jax.ShapeDtypeStruct((Bp, D4), jnp.float32),
        grid=grid,
        in_specs=[
            pl.BlockSpec((tm, D0), lambda i: (i, 0)),   # x tile (pipelined)
            wspec((D0, D1)), wspec((1, D1)),
            wspec((D1, D2)), wspec((1, D2)),
            wspec((D2, D3)), wspec((1, D3)),
            wspec((D3, D4)), wspec((1, D4)),
        ],
        out_specs=pl.BlockSpec((tm, D4), lambda i: (i, 0)),
        compiler_params=pltpu.CompilerParams(
            dimension_semantics=("parallel",),   # v7x: shard batch across TCs
            vmem_limit_bytes=vmem_limit),
        cost_estimate=pl.CostEstimate(
            flops=flops, transcendentals=0, bytes_accessed=bytes_accessed),
    )(xp, w1, b1, w2, b2, w3, b3, w4, b4)

    return out[:B, :num_classes]


_SINGLE_BUFFER_OK = None   # resolved on the first forward call


def fully_connected_net(x, prepared, *, num_classes: int, tm: int | None = None):
    """Forward pass of FullyConnectedNet.

    x: (B, C, H, W) float32 (NCHW, as the PyTorch module receives).
    prepared: output of prepare_params() (bf16-padded weights, f32 biases).
    Returns: (B, num_classes) float32 logits.
    """
    global _SINGLE_BUFFER_OK
    tm = _pick_tm(x.shape[0], tm)
    if _SINGLE_BUFFER_OK is None:
        try:
            out = _forward(x, prepared, num_classes=num_classes, tm=tm,
                           single_buffer_weights=True)
            jax.block_until_ready(out)
            _SINGLE_BUFFER_OK = True
            return out
        except Exception:
            # This JAX build rejects buffer_count=1 for pipelined blocks; fall
            # back to default double-buffered constant blocks (same results).
            _SINGLE_BUFFER_OK = False
    return _forward(x, prepared, num_classes=num_classes, tm=tm,
                    single_buffer_weights=_SINGLE_BUFFER_OK)


def init_params(key, input_dim, layer1_dim, layer2_dim, layer3_dim, num_classes):
    """Deterministic synthetic init (Kaiming-uniform-ish like PyTorch defaults)."""
    dims = [(input_dim, layer1_dim),
            (layer1_dim, layer2_dim),
            (layer2_dim, layer3_dim),
            (layer3_dim, num_classes)]
    params = {}
    for i, (fan_in, fan_out) in enumerate(dims, start=1):
        key, kw, kb = jax.random.split(key, 3)
        bound = 1.0 / jnp.sqrt(fan_in)
        params[f"w{i}"] = jax.random.uniform(
            kw, (fan_in, fan_out), jnp.float32, -bound, bound)
        params[f"b{i}"] = jax.random.uniform(
            kb, (1, fan_out), jnp.float32, -bound, bound)
    return params


def _reference(x, params):
    """Pure-JAX reference mirroring the kernel's bf16-operand / f32-accumulate
    numerics (MXU accumulation order may differ slightly; covered by the test
    tolerance)."""
    bd = lambda a: a.astype(jnp.bfloat16).astype(jnp.float32)
    h = bd(x.reshape(x.shape[0], -1))
    h = jnp.maximum(h @ bd(params["w1"]) + params["b1"], 0.0)
    h = jnp.maximum(bd(h) @ bd(params["w2"]) + params["b2"], 0.0)
    h = jnp.maximum(bd(h) @ bd(params["w3"]) + params["b3"], 0.0)
    return bd(h) @ bd(params["w4"]) + params["b4"]


if __name__ == "__main__":
    key = jax.random.PRNGKey(0)

    # Small MNIST/CIFAR-like shapes: batch=2, channels=4, spatial=16x16
    B, C, H, W = 2, 4, 16, 16
    input_dim = C * H * W          # 1024
    layer1_dim, layer2_dim, layer3_dim = 256, 128, 64
    num_classes = 10

    key, kx = jax.random.split(key)
    x = jax.random.normal(kx, (B, C, H, W), jnp.float32)

    params = init_params(key, input_dim, layer1_dim, layer2_dim,
                         layer3_dim, num_classes)
    prepared = prepare_params(params)   # one-time cast/pad, reused per call

    out = fully_connected_net(x, prepared, num_classes=num_classes)
    out = jax.block_until_ready(out)

    ref = _reference(x, params)
    assert out.shape == (B, num_classes)
    assert jnp.allclose(out, ref, atol=1e-3, rtol=1e-3), "mismatch vs reference"

    print("KERNEL_OK")
</pallas_src>

<mosaic_0001>
module attributes {stable_mosaic.version = 11 : i64} {
  func.func @_mlp_kernel(%arg0: i32, %arg1: memref<8x1024xf32, #tpu.memory_space<vmem>>, %arg2: memref<1024x256xbf16, #tpu.memory_space<vmem>>, %arg3: memref<1x256xf32, #tpu.memory_space<vmem>>, %arg4: memref<256x128xbf16, #tpu.memory_space<vmem>>, %arg5: memref<1x128xf32, #tpu.memory_space<vmem>>, %arg6: memref<128x128xbf16, #tpu.memory_space<vmem>>, %arg7: memref<1x128xf32, #tpu.memory_space<vmem>>, %arg8: memref<128x128xbf16, #tpu.memory_space<vmem>>, %arg9: memref<1x128xf32, #tpu.memory_space<vmem>>, %arg10: memref<8x128xf32, #tpu.memory_space<vmem>>) attributes {dimension_semantics = [#tpu.dimension_semantics<parallel>], iteration_bounds = array<i64: 1>, scalar_prefetch = 0 : i64, scratch_operands = 0 : i64, tpu.core_type = #tpu.core_type<tc>, window_params = [{transform_indices = @transform_0, window_bounds = array<i64: 8, 1024>}, {pipeline_mode = #tpu.pipeline_mode<synchronous>, transform_indices = @transform_1, window_bounds = array<i64: 1024, 256>}, {pipeline_mode = #tpu.pipeline_mode<synchronous>, transform_indices = @transform_2, window_bounds = array<i64: 1, 256>}, {pipeline_mode = #tpu.pipeline_mode<synchronous>, transform_indices = @transform_3, window_bounds = array<i64: 256, 128>}, {pipeline_mode = #tpu.pipeline_mode<synchronous>, transform_indices = @transform_4, window_bounds = array<i64: 1, 128>}, {pipeline_mode = #tpu.pipeline_mode<synchronous>, transform_indices = @transform_5, window_bounds = array<i64: 128, 128>}, {pipeline_mode = #tpu.pipeline_mode<synchronous>, transform_indices = @transform_6, window_bounds = array<i64: 1, 128>}, {pipeline_mode = #tpu.pipeline_mode<synchronous>, transform_indices = @transform_7, window_bounds = array<i64: 128, 128>}, {pipeline_mode = #tpu.pipeline_mode<synchronous>, transform_indices = @transform_8, window_bounds = array<i64: 1, 128>}, {transform_indices = @transform_9, window_bounds = array<i64: 8, 128>}]} {
    %c0 = arith.constant 0 : index
    %c0_0 = arith.constant 0 : index
    %0 = vector.load %arg1[%c0, %c0_0] : memref<8x1024xf32, #tpu.memory_space<vmem>>, vector<8x1024xf32>
    %1 = arith.truncf %0 : vector<8x1024xf32> to vector<8x1024xbf16>
    %c0_1 = arith.constant 0 : index
    %c0_2 = arith.constant 0 : index
    %2 = vector.load %arg2[%c0_1, %c0_2] : memref<1024x256xbf16, #tpu.memory_space<vmem>>, vector<1024x256xbf16>
    %cst = arith.constant dense<0.000000e+00> : vector<8x256xf32>
    %3 = tpu.matmul %1, %2, %cst {dimension_numbers = #tpu.dot_dimension_numbers<[1], [0], [0], [1], [0, 0, 1, 1], [], []>} : vector<8x1024xbf16>, vector<1024x256xbf16>, vector<8x256xf32> -> vector<8x256xf32>
    %c0_3 = arith.constant 0 : index
    %c0_4 = arith.constant 0 : index
    %4 = vector.load %arg3[%c0_3, %c0_4] : memref<1x256xf32, #tpu.memory_space<vmem>>, vector<1x256xf32>
    %5 = vector.broadcast %4 : vector<1x256xf32> to vector<8x256xf32>
    %6 = arith.addf %3, %5 : vector<8x256xf32>
    %cst_5 = arith.constant 0.000000e+00 : f32
    %7 = vector.broadcast %cst_5 : f32 to vector<8x256xf32>
    %8 = arith.maximumf %6, %7 : vector<8x256xf32>
    %9 = arith.truncf %8 : vector<8x256xf32> to vector<8x256xbf16>
    %c0_6 = arith.constant 0 : index
    %c0_7 = arith.constant 0 : index
    %10 = vector.load %arg4[%c0_6, %c0_7] : memref<256x128xbf16, #tpu.memory_space<vmem>>, vector<256x128xbf16>
    %cst_8 = arith.constant dense<0.000000e+00> : vector<8x128xf32>
    %11 = tpu.matmul %9, %10, %cst_8 {dimension_numbers = #tpu.dot_dimension_numbers<[1], [0], [0], [1], [0, 0, 1, 1], [], []>} : vector<8x256xbf16>, vector<256x128xbf16>, vector<8x128xf32> -> vector<8x128xf32>
    %c0_9 = arith.constant 0 : index
    %c0_10 = arith.constant 0 : index
    %12 = vector.load %arg5[%c0_9, %c0_10] : memref<1x128xf32, #tpu.memory_space<vmem>>, vector<1x128xf32>
    %13 = vector.broadcast %12 : vector<1x128xf32> to vector<8x128xf32>
    %14 = arith.addf %11, %13 : vector<8x128xf32>
    %cst_11 = arith.constant 0.000000e+00 : f32
    %15 = vector.broadcast %cst_11 : f32 to vector<8x128xf32>
    %16 = arith.maximumf %14, %15 : vector<8x128xf32>
    %17 = arith.truncf %16 : vector<8x128xf32> to vector<8x128xbf16>
    %c0_12 = arith.constant 0 : index
    %c0_13 = arith.constant 0 : index
    %18 = vector.load %arg6[%c0_12, %c0_13] : memref<128x128xbf16, #tpu.memory_space<vmem>>, vector<128x128xbf16>
    %cst_14 = arith.constant dense<0.000000e+00> : vector<8x128xf32>
    %19 = tpu.matmul %17, %18, %cst_14 {dimension_numbers = #tpu.dot_dimension_numbers<[1], [0], [0], [1], [0, 0, 1, 1], [], []>} : vector<8x128xbf16>, vector<128x128xbf16>, vector<8x128xf32> -> vector<8x128xf32>
    %c0_15 = arith.constant 0 : index
    %c0_16 = arith.constant 0 : index
    %20 = vector.load %arg7[%c0_15, %c0_16] : memref<1x128xf32, #tpu.memory_space<vmem>>, vector<1x128xf32>
    %21 = vector.broadcast %20 : vector<1x128xf32> to vector<8x128xf32>
    %22 = arith.addf %19, %21 : vector<8x128xf32>
    %cst_17 = arith.constant 0.000000e+00 : f32
    %23 = vector.broadcast %cst_17 : f32 to vector<8x128xf32>
    %24 = arith.maximumf %22, %23 : vector<8x128xf32>
    %25 = arith.truncf %24 : vector<8x128xf32> to vector<8x128xbf16>
    %c0_18 = arith.constant 0 : index
    %c0_19 = arith.constant 0 : index
    %26 = vector.load %arg8[%c0_18, %c0_19] : memref<128x128xbf16, #tpu.memory_space<vmem>>, vector<128x128xbf16>
    %cst_20 = arith.constant dense<0.000000e+00> : vector<8x128xf32>
    %27 = tpu.matmul %25, %26, %cst_20 {dimension_numbers = #tpu.dot_dimension_numbers<[1], [0], [0], [1], [0, 0, 1, 1], [], []>} : vector<8x128xbf16>, vector<128x128xbf16>, vector<8x128xf32> -> vector<8x128xf32>
    %c0_21 = arith.constant 0 : index
    %c0_22 = arith.constant 0 : index
    %28 = vector.load %arg9[%c0_21, %c0_22] : memref<1x128xf32, #tpu.memory_space<vmem>>, vector<1x128xf32>
    %29 = vector.broadcast %28 : vector<1x128xf32> to vector<8x128xf32>
    %30 = arith.addf %27, %29 : vector<8x128xf32>
    %c0_23 = arith.constant 0 : index
    %c0_24 = arith.constant 0 : index
    %31 = vector.load %arg10[%c0_23, %c0_24] : memref<8x128xf32, #tpu.memory_space<vmem>>, vector<8x128xf32>
    tpu.vector_store %arg10[%c0_23, %c0_24], %30 {strides = array<i32>} : memref<8x128xf32, #tpu.memory_space<vmem>>, vector<8x128xf32>,
    return
  }
  func.func @transform_0(%arg0: i32) -> (i32, i32) {
    %c0_i32 = arith.constant 0 : i32
    %c0_i32_0 = arith.constant 0 : i32
    return %arg0, %c0_i32 : i32, i32
  }
  func.func @transform_1(%arg0: i32) -> (i32, i32) {
    %c0_i32 = arith.constant 0 : i32
    %c0_i32_0 = arith.constant 0 : i32
    %c0_i32_1 = arith.constant 0 : i32
    return %c0_i32, %c0_i32_0 : i32, i32
  }
  func.func @transform_2(%arg0: i32) -> (i32, i32) {
    %c0_i32 = arith.constant 0 : i32
    %c0_i32_0 = arith.constant 0 : i32
    %c0_i32_1 = arith.constant 0 : i32
    return %c0_i32, %c0_i32_0 : i32, i32
  }
  func.func @transform_3(%arg0: i32) -> (i32, i32) {
    %c0_i32 = arith.constant 0 : i32
    %c0_i32_0 = arith.constant 0 : i32
    %c0_i32_1 = arith.constant 0 : i32
    return %c0_i32, %c0_i32_0 : i32, i32
  }
  func.func @transform_4(%arg0: i32) -> (i32, i32) {
    %c0_i32 = arith.constant 0 : i32
    %c0_i32_0 = arith.constant 0 : i32
    %c0_i32_1 = arith.constant 0 : i32
    return %c0_i32, %c0_i32_0 : i32, i32
  }
  func.func @transform_5(%arg0: i32) -> (i32, i32) {
    %c0_i32 = arith.constant 0 : i32
    %c0_i32_0 = arith.constant 0 : i32
    %c0_i32_1 = arith.constant 0 : i32
    return %c0_i32, %c0_i32_0 : i32, i32
  }
  func.func @transform_6(%arg0: i32) -> (i32, i32) {
    %c0_i32 = arith.constant 0 : i32
    %c0_i32_0 = arith.constant 0 : i32
    %c0_i32_1 = arith.constant 0 : i32
    return %c0_i32, %c0_i32_0 : i32, i32
  }
  func.func @transform_7(%arg0: i32) -> (i32, i32) {
    %c0_i32 = arith.constant 0 : i32
    %c0_i32_0 = arith.constant 0 : i32
    %c0_i32_1 = arith.constant 0 : i32
    return %c0_i32, %c0_i32_0 : i32, i32
  }
  func.func @transform_8(%arg0: i32) -> (i32, i32) {
    %c0_i32 = arith.constant 0 : i32
    %c0_i32_0 = arith.constant 0 : i32
    %c0_i32_1 = arith.constant 0 : i32
    return %c0_i32, %c0_i32_0 : i32, i32
  }
  func.func @transform_9(%arg0: i32) -> (i32, i32) {
    %c0_i32 = arith.constant 0 : i32
    %c0_i32_0 = arith.constant 0 : i32
    return %arg0, %c0_i32 : i32, i32
  }
}

module attributes {stable_mosaic.version = 11 : i64} {
  func.func @_mlp_kernel(%arg0: i32, %arg1: memref<8x1024xf32, #tpu.memory_space<vmem>>, %arg2: memref<1024x256xbf16, #tpu.memory_space<vmem>>, %arg3: memref<1x256xf32, #tpu.memory_space<vmem>>, %arg4: memref<256x128xbf16, #tpu.memory_space<vmem>>, %arg5: memref<1x128xf32, #tpu.memory_space<vmem>>, %arg6: memref<128x128xbf16, #tpu.memory_space<vmem>>, %arg7: memref<1x128xf32, #tpu.memory_space<vmem>>, %arg8: memref<128x128xbf16, #tpu.memory_space<vmem>>, %arg9: memref<1x128xf32, #tpu.memory_space<vmem>>, %arg10: memref<8x128xf32, #tpu.memory_space<vmem>>) attributes {dimension_semantics = [#tpu.dimension_semantics<parallel>], iteration_bounds = array<i64: 1>, scalar_prefetch = 0 : i64, scratch_operands = 0 : i64, tpu.core_type = #tpu.core_type<tc>, window_params = [{transform_indices = @transform_0, window_bounds = array<i64: 8, 1024>}, {pipeline_mode = #tpu.pipeline_mode<synchronous>, transform_indices = @transform_1, window_bounds = array<i64: 1024, 256>}, {pipeline_mode = #tpu.pipeline_mode<synchronous>, transform_indices = @transform_2, window_bounds = array<i64: 1, 256>}, {pipeline_mode = #tpu.pipeline_mode<synchronous>, transform_indices = @transform_3, window_bounds = array<i64: 256, 128>}, {pipeline_mode = #tpu.pipeline_mode<synchronous>, transform_indices = @transform_4, window_bounds = array<i64: 1, 128>}, {pipeline_mode = #tpu.pipeline_mode<synchronous>, transform_indices = @transform_5, window_bounds = array<i64: 128, 128>}, {pipeline_mode = #tpu.pipeline_mode<synchronous>, transform_indices = @transform_6, window_bounds = array<i64: 1, 128>}, {pipeline_mode = #tpu.pipeline_mode<synchronous>, transform_indices = @transform_7, window_bounds = array<i64: 128, 128>}, {pipeline_mode = #tpu.pipeline_mode<synchronous>, transform_indices = @transform_8, window_bounds = array<i64: 1, 128>}, {transform_indices = @transform_9, window_bounds = array<i64: 8, 128>}]} {
    %c0 = arith.constant 0 : index
    %c0_0 = arith.constant 0 : index
    %0 = vector.load %arg1[%c0, %c0_0] : memref<8x1024xf32, #tpu.memory_space<vmem>>, vector<8x1024xf32>
    %1 = arith.truncf %0 : vector<8x1024xf32> to vector<8x1024xbf16>
    %c0_1 = arith.constant 0 : index
    %c0_2 = arith.constant 0 : index
    %2 = vector.load %arg2[%c0_1, %c0_2] : memref<1024x256xbf16, #tpu.memory_space<vmem>>, vector<1024x256xbf16>
    %cst = arith.constant dense<0.000000e+00> : vector<8x256xf32>
    %3 = tpu.matmul %1, %2, %cst {dimension_numbers = #tpu.dot_dimension_numbers<[1], [0], [0], [1], [0, 0, 1, 1], [], []>} : vector<8x1024xbf16>, vector<1024x256xbf16>, vector<8x256xf32> -> vector<8x256xf32>
    %c0_3 = arith.constant 0 : index
    %c0_4 = arith.constant 0 : index
    %4 = vector.load %arg3[%c0_3, %c0_4] : memref<1x256xf32, #tpu.memory_space<vmem>>, vector<1x256xf32>
    %5 = vector.broadcast %4 : vector<1x256xf32> to vector<8x256xf32>
    %6 = arith.addf %3, %5 : vector<8x256xf32>
    %cst_5 = arith.constant 0.000000e+00 : f32
    %7 = vector.broadcast %cst_5 : f32 to vector<8x256xf32>
    %8 = arith.maximumf %6, %7 : vector<8x256xf32>
    %9 = arith.truncf %8 : vector<8x256xf32> to vector<8x256xbf16>
    %c0_6 = arith.constant 0 : index
    %c0_7 = arith.constant 0 : index
    %10 = vector.load %arg4[%c0_6, %c0_7] : memref<256x128xbf16, #tpu.memory_space<vmem>>, vector<256x128xbf16>
    %cst_8 = arith.constant dense<0.000000e+00> : vector<8x128xf32>
    %11 = tpu.matmul %9, %10, %cst_8 {dimension_numbers = #tpu.dot_dimension_numbers<[1], [0], [0], [1], [0, 0, 1, 1], [], []>} : vector<8x256xbf16>, vector<256x128xbf16>, vector<8x128xf32> -> vector<8x128xf32>
    %c0_9 = arith.constant 0 : index
    %c0_10 = arith.constant 0 : index
    %12 = vector.load %arg5[%c0_9, %c0_10] : memref<1x128xf32, #tpu.memory_space<vmem>>, vector<1x128xf32>
    %13 = vector.broadcast %12 : vector<1x128xf32> to vector<8x128xf32>
    %14 = arith.addf %11, %13 : vector<8x128xf32>
    %cst_11 = arith.constant 0.000000e+00 : f32
    %15 = vector.broadcast %cst_11 : f32 to vector<8x128xf32>
    %16 = arith.maximumf %14, %15 : vector<8x128xf32>
    %17 = arith.truncf %16 : vector<8x128xf32> to vector<8x128xbf16>
    %c0_12 = arith.constant 0 : index
    %c0_13 = arith.constant 0 : index
    %18 = vector.load %arg6[%c0_12, %c0_13] : memref<128x128xbf16, #tpu.memory_space<vmem>>, vector<128x128xbf16>
    %cst_14 = arith.constant dense<0.000000e+00> : vector<8x128xf32>
    %19 = tpu.matmul %17, %18, %cst_14 {dimension_numbers = #tpu.dot_dimension_numbers<[1], [0], [0], [1], [0, 0, 1, 1], [], []>} : vector<8x128xbf16>, vector<128x128xbf16>, vector<8x128xf32> -> vector<8x128xf32>
    %c0_15 = arith.constant 0 : index
    %c0_16 = arith.constant 0 : index
    %20 = vector.load %arg7[%c0_15, %c0_16] : memref<1x128xf32, #tpu.memory_space<vmem>>, vector<1x128xf32>
    %21 = vector.broadcast %20 : vector<1x128xf32> to vector<8x128xf32>
    %22 = arith.addf %19, %21 : vector<8x128xf32>
    %cst_17 = arith.constant 0.000000e+00 : f32
    %23 = vector.broadcast %cst_17 : f32 to vector<8x128xf32>
    %24 = arith.maximumf %22, %23 : vector<8x128xf32>
    %25 = arith.truncf %24 : vector<8x128xf32> to vector<8x128xbf16>
    %c0_18 = arith.constant 0 : index
    %c0_19 = arith.constant 0 : index
    %26 = vector.load %arg8[%c0_18, %c0_19] : memref<128x128xbf16, #tpu.memory_space<vmem>>, vector<128x128xbf16>
    %cst_20 = arith.constant dense<0.000000e+00> : vector<8x128xf32>
    %27 = tpu.matmul %25, %26, %cst_20 {dimension_numbers = #tpu.dot_dimension_numbers<[1], [0], [0], [1], [0, 0, 1, 1], [], []>} : vector<8x128xbf16>, vector<128x128xbf16>, vector<8x128xf32> -> vector<8x128xf32>
    %c0_21 = arith.constant 0 : index
    %c0_22 = arith.constant 0 : index
    %28 = vector.load %arg9[%c0_21, %c0_22] : memref<1x128xf32, #tpu.memory_space<vmem>>, vector<1x128xf32>
    %29 = vector.broadcast %28 : vector<1x128xf32> to vector<8x128xf32>
    %30 = arith.addf %27, %29 : vector<8x128xf32>
    %c0_23 = arith.constant 0 : index
    %c0_24 = arith.constant 0 : index
    %31 = vector.load %arg10[%c0_23, %c0_24] : memref<8x128xf32, #tpu.memory_space<vmem>>, vector<8x128xf32>
    tpu.vector_store %arg10[%c0_23, %c0_24], %30 {strides = array<i32>} : memref<8x128xf32, #tpu.memory_space<vmem>>, vector<8x128xf32>,
    return
  }
  func.func @transform_0(%arg0: i32) -> (i32, i32) {
    %c0_i32 = arith.constant 0 : i32
    %c0_i32_0 = arith.constant 0 : i32
    return %arg0, %c0_i32 : i32, i32
  }
  func.func @transform_1(%arg0: i32) -> (i32, i32) {
    %c0_i32 = arith.constant 0 : i32
    %c0_i32_0 = arith.constant 0 : i32
    %c0_i32_1 = arith.constant 0 : i32
    return %c0_i32, %c0_i32_0 : i32, i32
  }
  func.func @transform_2(%arg0: i32) -> (i32, i32) {
    %c0_i32 = arith.constant 0 : i32
    %c0_i32_0 = arith.constant 0 : i32
    %c0_i32_1 = arith.constant 0 : i32
    return %c0_i32, %c0_i32_0 : i32, i32
  }
  func.func @transform_3(%arg0: i32) -> (i32, i32) {
    %c0_i32 = arith.constant 0 : i32
    %c0_i32_0 = arith.constant 0 : i32
    %c0_i32_1 = arith.constant 0 : i32
    return %c0_i32, %c0_i32_0 : i32, i32
  }
  func.func @transform_4(%arg0: i32) -> (i32, i32) {
    %c0_i32 = arith.constant 0 : i32
    %c0_i32_0 = arith.constant 0 : i32
    %c0_i32_1 = arith.constant 0 : i32
    return %c0_i32, %c0_i32_0 : i32, i32
  }
  func.func @transform_5(%arg0: i32) -> (i32, i32) {
    %c0_i32 = arith.constant 0 : i32
    %c0_i32_0 = arith.constant 0 : i32
    %c0_i32_1 = arith.constant 0 : i32
    return %c0_i32, %c0_i32_0 : i32, i32
  }
  func.func @transform_6(%arg0: i32) -> (i32, i32) {
    %c0_i32 = arith.constant 0 : i32
    %c0_i32_0 = arith.constant 0 : i32
    %c0_i32_1 = arith.constant 0 : i32
    return %c0_i32, %c0_i32_0 : i32, i32
  }
  func.func @transform_7(%arg0: i32) -> (i32, i32) {
    %c0_i32 = arith.constant 0 : i32
    %c0_i32_0 = arith.constant 0 : i32
    %c0_i32_1 = arith.constant 0 : i32
    return %c0_i32, %c0_i32_0 : i32, i32
  }
  func.func @transform_8(%arg0: i32) -> (i32, i32) {
    %c0_i32 = arith.constant 0 : i32
    %c0_i32_0 = arith.constant 0 : i32
    %c0_i32_1 = arith.constant 0 : i32
    return %c0_i32, %c0_i32_0 : i32, i32
  }
  func.func @transform_9(%arg0: i32) -> (i32, i32) {
    %c0_i32 = arith.constant 0 : i32
    %c0_i32_0 = arith.constant 0 : i32
    return %arg0, %c0_i32 : i32, i32
  }
}

</mosaic_0001>

<llo_original>
// kernel: _forward.1
$region0: #{_forward.1}
  #allocation0 [shape = 'u32[]', space=smem, size = 0x4, offset = 0x4, fixed_abs, tag = 'smem constant byte address 0x4 - core index']
  #allocation1 [shape = 'u32[144,128]{1,0:T(1,128)}', space=vmem, size = 0x12000, scoped, tag = 'internal scratch']
  %s0 = inlined_call_operand.vmem [shape: f32[8,1024], index: 0, kind: input, shape index: {}]
  %s1 = inlined_call_operand.hbm [shape: bf16[1024,256], index: 1, kind: input, shape index: {}]
  %s2 = inlined_call_operand.vmem [shape: f32[1,256], index: 2, kind: input, shape index: {}]
  %s3 = inlined_call_operand.vmem [shape: bf16[256,128], index: 3, kind: input, shape index: {}]
  %s4 = inlined_call_operand.vmem [shape: f32[1,128], index: 4, kind: input, shape index: {}]
  %s5 = inlined_call_operand.vmem [shape: bf16[128,128], index: 5, kind: input, shape index: {}]
  %s6 = inlined_call_operand.vmem [shape: f32[1,128], index: 6, kind: input, shape index: {}]
  %s7 = inlined_call_operand.hbm [shape: bf16[128,128], index: 7, kind: input, shape index: {}]
  %s8 = inlined_call_operand.vmem [shape: f32[1,128], index: 8, kind: input, shape index: {}]
  %s9 = inlined_call_operand.vmem [shape: f32[8,128], index: 9, kind: output, shape index: {}]
  %s10 = sld [smem:[#allocation0]]
  $region54: #{_forward.1} parent=0
    _
  %s12 = ssub.s32 1, %s10
  %s13 = scalar_select 0, %s12, %s10
  $region1: #{_forward.1} parent=0
    #allocation2 [shape = 'u8[524288]{0}', space=vmem, size = 0x80000, scoped, tag = 'input window, operand 1, single buffered']
    #allocation3 [shape = 's32[1]{0}', space=sflag, size = 0x4, scoped, tag = 'scoped memory for _forward.1']
    #allocation4 [shape = 'u8[32768]{0}', space=vmem, size = 0x8000, scoped, tag = 'input window, operand 7, single buffered']
    #allocation5 [shape = 's32[1]{0}', space=sflag, size = 0x4, scoped, tag = 'scoped memory for _forward.1']
    %14 = vsyncpa [#allocation3], 0
    %15 = vsyncpa [#allocation5], 0
    // Predicated region
    $region2: #{_forward.1} parent=1 // pred_check
      _
    $region3: #{_forward.1} parent=1 // pred_check_branch
      %17 = sbr.rel (0) target = $region5
    $region4: #{_forward.1} parent=1 // pred_region
      _
    $region5: #{_forward.1} parent=1 // pred_fallthru
      _
    // Predicated region
    $region6: #{_forward.1} parent=1 // pred_check
      _
    $region7: #{_forward.1} parent=1 // pred_check_branch
      %19 = sbr.rel (0) target = $region9
    $region8: #{_forward.1} parent=1 // pred_region
      %s21 = ssub.s32 16384, 16384
      %22 = vsyncadd [#allocation3], %s21
      %s23 = sshll.u32 [#allocation2], 4
      %s24 = int_to_ptr.vmem [resolvable:$true] %s23
      %29 = dma.hbm_to_vmem [thread:$0]  %s1, 16384, %s24, [#allocation3], 128, 128, 8
    $region9: #{_forward.1} parent=1 // pred_fallthru
      _
    // Predicated region
    $region10: #{_forward.1} parent=1 // pred_check
      _
    $region11: #{_forward.1} parent=1 // pred_check_branch
      %31 = sbr.rel (0) target = $region13
    $region12: #{_forward.1} parent=1 // pred_region
      _
    $region13: #{_forward.1} parent=1 // pred_fallthru
      _
    // Predicated region
    $region14: #{_forward.1} parent=1 // pred_check
      _
    $region15: #{_forward.1} parent=1 // pred_check_branch
      %33 = sbr.rel (0) target = $region17
    $region16: #{_forward.1} parent=1 // pred_region
      _
    $region17: #{_forward.1} parent=1 // pred_fallthru
      _
    // Predicated region
    $region18: #{_forward.1} parent=1 // pred_check
      _
    $region19: #{_forward.1} parent=1 // pred_check_branch
      %35 = sbr.rel (0) target = $region21
    $region20: #{_forward.1} parent=1 // pred_region
      _
    $region21: #{_forward.1} parent=1 // pred_fallthru
      _
    // Predicated region
    $region22: #{_forward.1} parent=1 // pred_check
      _
    $region23: #{_forward.1} parent=1 // pred_check_branch
      %37 = sbr.rel (0) target = $region25
    $region24: #{_forward.1} parent=1 // pred_region
      _
    $region25: #{_forward.1} parent=1 // pred_fallthru
      _
    // Predicated region
    $region26: #{_forward.1} parent=1 // pred_check
      _
    $region27: #{_forward.1} parent=1 // pred_check_branch
      %39 = sbr.rel (0) target = $region29
    $region28: #{_forward.1} parent=1 // pred_region
      _
    $region29: #{_forward.1} parent=1 // pred_fallthru
      _
    // Predicated region
    $region30: #{_forward.1} parent=1 // pred_check
      _
    $region31: #{_forward.1} parent=1 // pred_check_branch
      %41 = sbr.rel (0) target = $region33
    $region32: #{_forward.1} parent=1 // pred_region
      %s43 = ssub.s32 1024, 1024
      %44 = vsyncadd [#allocation5], %s43
      %s45 = sshll.u32 [#allocation4], 4
      %s46 = int_to_ptr.vmem [resolvable:$true] %s45
      %51 = dma.hbm_to_vmem [thread:$0]  %s7, 1024, %s46, [#allocation5], 64, 64, 4
    $region33: #{_forward.1} parent=1 // pred_fallthru
      _
    // Predicated region
    $region34: #{_forward.1} parent=1 // pred_check
      _
    $region35: #{_forward.1} parent=1 // pred_check_branch
      %53 = sbr.rel (0) target = $region37
    $region36: #{_forward.1} parent=1 // pred_region
      _
    $region37: #{_forward.1} parent=1 // pred_fallthru
      _
    // Predicated region
    $region38: #{_forward.1} parent=1 // pred_check
      _
    $region39: #{_forward.1} parent=1 // pred_check_branch
      %55 = sbr.rel (0) target = $region41
    $region40: #{_forward.1} parent=1 // pred_region
      %56 = dma.done [#allocation3], 16384
    $region41: #{_forward.1} parent=1 // pred_fallthru
      _
    // Predicated region
    $region42: #{_forward.1} parent=1 // pred_check
      _
    $region43: #{_forward.1} parent=1 // pred_check_branch
      %58 = sbr.rel (0) target = $region45
    $region44: #{_forward.1} parent=1 // pred_region
      %59 = dma.done [#allocation5], 1024
    $region45: #{_forward.1} parent=1 // pred_fallthru
      _
    %v61 = vld [vmem:[%s0] sm:$0xff]
    %v62 = vld [vmem:[%s0 + $0x8] sm:$0xff]
    %v63 = vld [vmem:[%s0 + $0x10] sm:$0xff]
    %v64 = vld [vmem:[%s0 + $0x18] sm:$0xff]
    %v65 = vld [vmem:[%s0 + $0x20] sm:$0xff]
    %v66 = vld [vmem:[%s0 + $0x28] sm:$0xff]
    %v67 = vld [vmem:[%s0 + $0x30] sm:$0xff]
    %v68 = vld [vmem:[%s0 + $0x38] sm:$0xff]
    %v69 = vpack.c.bf16 %v61, %v61
    %v70 = vpack.c.bf16 %v62, %v62
    %v71 = vpack.c.bf16 %v63, %v63
    %v72 = vpack.c.bf16 %v64, %v64
    %v73 = vpack.c.bf16 %v65, %v65
    %v74 = vpack.c.bf16 %v66, %v66
    %v75 = vpack.c.bf16 %v67, %v67
    %v76 = vpack.c.bf16 %v68, %v68
    %v77 = vld [vmem:[#allocation2] sm:$0xff]
    %v78 = vld [vmem:[#allocation2 + $0x8] sm:$0xff]
    %v79 = vld [vmem:[#allocation2 + $0x10] sm:$0xff]
    %v80 = vld [vmem:[#allocation2 + $0x18] sm:$0xff]
    %v81 = vld [vmem:[#allocation2 + $0x20] sm:$0xff]
    %v82 = vld [vmem:[#allocation2 + $0x28] sm:$0xff]
    %v83 = vld [vmem:[#allocation2 + $0x30] sm:$0xff]
    %v84 = vld [vmem:[#allocation2 + $0x38] sm:$0xff]
    %v85 = vld [vmem:[#allocation2 + $0x40] sm:$0xff]
    %v86 = vld [vmem:[#allocation2 + $0x48] sm:$0xff]
    %v87 = vld [vmem:[#allocation2 + $0x50] sm:$0xff]
    %v88 = vld [vmem:[#allocation2 + $0x58] sm:$0xff]
    %v89 = vld [vmem:[#allocation2 + $0x60] sm:$0xff]
    %v90 = vld [vmem:[#allocation2 + $0x68] sm:$0xff]
    %v91 = vld [vmem:[#allocation2 + $0x70] sm:$0xff]
    %v92 = vld [vmem:[#allocation2 + $0x78] sm:$0xff]
    %v93 = vld [vmem:[#allocation2 + $0x80] sm:$0xff]
    %v94 = vld [vmem:[#allocation2 + $0x88] sm:$0xff]
    %v95 = vld [vmem:[#allocation2 + $0x90] sm:$0xff]
    %v96 = vld [vmem:[#allocation2 + $0x98] sm:$0xff]
    %v97 = vld [vmem:[#allocation2 + $0xa0] sm:$0xff]
    %v98 = vld [vmem:[#allocation2 + $0xa8] sm:$0xff]
    %v99 = vld [vmem:[#allocation2 + $0xb0] sm:$0xff]
    %v100 = vld [vmem:[#allocation2 + $0xb8] sm:$0xff]
    %v101 = vld [vmem:[#allocation2 + $0xc0] sm:$0xff]
    %v102 = vld [vmem:[#allocation2 + $0xc8] sm:$0xff]
    %v103 = vld [vmem:[#allocation2 + $0xd0] sm:$0xff]
    %v104 = vld [vmem:[#allocation2 + $0xd8] sm:$0xff]
    %v105 = vld [vmem:[#allocation2 + $0xe0] sm:$0xff]
    %v106 = vld [vmem:[#allocation2 + $0xe8] sm:$0xff]
    %v107 = vld [vmem:[#allocation2 + $0xf0] sm:$0xff]
    %v108 = vld [vmem:[#allocation2 + $0xf8] sm:$0xff]
    %v109 = vld [vmem:[#allocation2 + $0x100] sm:$0xff]
    %v110 = vld [vmem:[#allocation2 + $0x108] sm:$0xff]
    %v111 = vld [vmem:[#allocation2 + $0x110] sm:$0xff]
    %v112 = vld [vmem:[#allocation2 + $0x118] sm:$0xff]
    %v113 = vld [vmem:[#allocation2 + $0x120] sm:$0xff]
    %v114 = vld [vmem:[#allocation2 + $0x128] sm:$0xff]
    %v115 = vld [vmem:[#allocation2 + $0x130] sm:$0xff]
    %v116 = vld [vmem:[#allocation2 + $0x138] sm:$0xff]
    %v117 = vld [vmem:[#allocation2 + $0x140] sm:$0xff]
    %v118 = vld [vmem:[#allocation2 + $0x148] sm:$0xff]
    %v119 = vld [vmem:[#allocation2 + $0x150] sm:$0xff]
    %v120 = vld [vmem:[#allocation2 + $0x158] sm:$0xff]
    %v121 = vld [vmem:[#allocation2 + $0x160] sm:$0xff]
    %v122 = vld [vmem:[#allocation2 + $0x168] sm:$0xff]
    %v123 = vld [vmem:[#allocation2 + $0x170] sm:$0xff]
    %v124 = vld [vmem:[#allocation2 + $0x178] sm:$0xff]
    %v125 = vld [vmem:[#allocation2 + $0x180] sm:$0xff]
    %v126 = vld [vmem:[#allocation2 + $0x188] sm:$0xff]
    %v127 = vld [vmem:[#allocation2 + $0x190] sm:$0xff]
    %v128 = vld [vmem:[#allocation2 + $0x198] sm:$0xff]
    %v129 = vld [vmem:[#allocation2 + $0x1a0] sm:$0xff]
    %v130 = vld [vmem:[#allocation2 + $0x1a8] sm:$0xff]
    %v131 = vld [vmem:[#allocation2 + $0x1b0] sm:$0xff]
    %v132 = vld [vmem:[#allocation2 + $0x1b8] sm:$0xff]
    %v133 = vld [vmem:[#allocation2 + $0x1c0] sm:$0xff]
    %v134 = vld [vmem:[#allocation2 + $0x1c8] sm:$0xff]
    %v135 = vld [vmem:[#allocation2 + $0x1d0] sm:$0xff]
    %v136 = vld [vmem:[#allocation2 + $0x1d8] sm:$0xff]
    %v137 = vld [vmem:[#allocation2 + $0x1e0] sm:$0xff]
    %v138 = vld [vmem:[#allocation2 + $0x1e8] sm:$0xff]
    %v139 = vld [vmem:[#allocation2 + $0x1f0] sm:$0xff]
    %v140 = vld [vmem:[#allocation2 + $0x1f8] sm:$0xff]
    %v141 = vld [vmem:[#allocation2 + $0x200] sm:$0xff]
    %v142 = vld [vmem:[#allocation2 + $0x208] sm:$0xff]
    %v143 = vld [vmem:[#allocation2 + $0x210] sm:$0xff]
    %v144 = vld [vmem:[#allocation2 + $0x218] sm:$0xff]
    %v145 = vld [vmem:[#allocation2 + $0x220] sm:$0xff]
    %v146 = vld [vmem:[#allocation2 + $0x228] sm:$0xff]
    %v147 = vld [vmem:[#allocation2 + $0x230] sm:$0xff]
    %v148 = vld [vmem:[#allocation2 + $0x238] sm:$0xff]
    %v149 = vld [vmem:[#allocation2 + $0x240] sm:$0xff]
    %v150 = vld [vmem:[#allocation2 + $0x248] sm:$0xff]
    %v151 = vld [vmem:[#allocation2 + $0x250] sm:$0xff]
    %v152 = vld [vmem:[#allocation2 + $0x258] sm:$0xff]
    %v153 = vld [vmem:[#allocation2 + $0x260] sm:$0xff]
    %v154 = vld [vmem:[#allocation2 + $0x268] sm:$0xff]
    %v155 = vld [vmem:[#allocation2 + $0x270] sm:$0xff]
    %v156 = vld [vmem:[#allocation2 + $0x278] sm:$0xff]
    %v157 = vld [vmem:[#allocation2 + $0x280] sm:$0xff]
    %v158 = vld [vmem:[#allocation2 + $0x288] sm:$0xff]
    %v159 = vld [vmem:[#allocation2 + $0x290] sm:$0xff]
    %v160 = vld [vmem:[#allocation2 + $0x298] sm:$0xff]
    %v161 = vld [vmem:[#allocation2 + $0x2a0] sm:$0xff]
    %v162 = vld [vmem:[#allocation2 + $0x2a8] sm:$0xff]
    %v163 = vld [vmem:[#allocation2 + $0x2b0] sm:$0xff]
    %v164 = vld [vmem:[#allocation2 + $0x2b8] sm:$0xff]
    %v165 = vld [vmem:[#allocation2 + $0x2c0] sm:$0xff]
    %v166 = vld [vmem:[#allocation2 + $0x2c8] sm:$0xff]
    %v167 = vld [vmem:[#allocation2 + $0x2d0] sm:$0xff]
    %v168 = vld [vmem:[#allocation2 + $0x2d8] sm:$0xff]
    %v169 = vld [vmem:[#allocation2 + $0x2e0] sm:$0xff]
    %v170 = vld [vmem:[#allocation2 + $0x2e8] sm:$0xff]
    %v171 = vld [vmem:[#allocation2 + $0x2f0] sm:$0xff]
    %v172 = vld [vmem:[#allocation2 + $0x2f8] sm:$0xff]
    %v173 = vld [vmem:[#allocation2 + $0x300] sm:$0xff]
    %v174 = vld [vmem:[#allocation2 + $0x308] sm:$0xff]
    %v175 = vld [vmem:[#allocation2 + $0x310] sm:$0xff]
    %v176 = vld [vmem:[#allocation2 + $0x318] sm:$0xff]
    %v177 = vld [vmem:[#allocation2 + $0x320] sm:$0xff]
    %v178 = vld [vmem:[#allocation2 + $0x328] sm:$0xff]
    %v179 = vld [vmem:[#allocation2 + $0x330] sm:$0xff]
    %v180 = vld [vmem:[#allocation2 + $0x338] sm:$0xff]
    %v181 = vld [vmem:[#allocation2 + $0x340] sm:$0xff]
    %v182 = vld [vmem:[#allocation2 + $0x348] sm:$0xff]
    %v183 = vld [vmem:[#allocation2 + $0x350] sm:$0xff]
    %v184 = vld [vmem:[#allocation2 + $0x358] sm:$0xff]
    %v185 = vld [vmem:[#allocation2 + $0x360] sm:$0xff]
    %v186 = vld [vmem:[#allocation2 + $0x368] sm:$0xff]
    %v187 = vld [vmem:[#allocation2 + $0x370] sm:$0xff]
    %v188 = vld [vmem:[#allocation2 + $0x378] sm:$0xff]
    %v189 = vld [vmem:[#allocation2 + $0x380] sm:$0xff]
    %v190 = vld [vmem:[#allocation2 + $0x388] sm:$0xff]
    %v191 = vld [vmem:[#allocation2 + $0x390] sm:$0xff]
    %v192 = vld [vmem:[#allocation2 + $0x398] sm:$0xff]
    %v193 = vld [vmem:[#allocation2 + $0x3a0] sm:$0xff]
    %v194 = vld [vmem:[#allocation2 + $0x3a8] sm:$0xff]
    %v195 = vld [vmem:[#allocation2 + $0x3b0] sm:$0xff]
    %v196 = vld [vmem:[#allocation2 + $0x3b8] sm:$0xff]
    %v197 = vld [vmem:[#allocation2 + $0x3c0] sm:$0xff]
    %v198 = vld [vmem:[#allocation2 + $0x3c8] sm:$0xff]
    %v199 = vld [vmem:[#allocation2 + $0x3d0] sm:$0xff]
    %v200 = vld [vmem:[#allocation2 + $0x3d8] sm:$0xff]
    %v201 = vld [vmem:[#allocation2 + $0x3e0] sm:$0xff]
    %v202 = vld [vmem:[#allocation2 + $0x3e8] sm:$0xff]
    %v203 = vld [vmem:[#allocation2 + $0x3f0] sm:$0xff]
    %v204 = vld [vmem:[#allocation2 + $0x3f8] sm:$0xff]
    %v205 = vld [vmem:[%s2] sm:$0x3]
    %v207 = vlaneseq
    %v208 = vshrl.u32 %v207, 7
    %v209 = vsub.s32 0, %v208
    %v210 = vrot.slane %v205, %v209
    %v211 = vlaneseq
    %v212 = vshrl.u32 %v211, 7
    %v213 = vsub.s32 1, %v212
    %v214 = vrot.slane %v205, %v213
    %v345 = vunpack.c.l.b16 %v77
    %v346 = vunpack.c.h.b16 %v77
    %v347 = vunpack.c.l.b16 %v78
    %v348 = vunpack.c.h.b16 %v78
    %v349 = vunpack.c.l.b16 %v79
    %v350 = vunpack.c.h.b16 %v79
    %v351 = vunpack.c.l.b16 %v80
    %v352 = vunpack.c.h.b16 %v80
    %v353 = vunpack.c.l.b16 %v81
    %v354 = vunpack.c.h.b16 %v81
    %v355 = vunpack.c.l.b16 %v82
    %v356 = vunpack.c.h.b16 %v82
    %v357 = vunpack.c.l.b16 %v83
    %v358 = vunpack.c.h.b16 %v83
    %v359 = vunpack.c.l.b16 %v84
    %v360 = vunpack.c.h.b16 %v84
    %v361 = vunpack.c.l.b16 %v85
    %v362 = vunpack.c.h.b16 %v85
    %v363 = vunpack.c.l.b16 %v86
    %v364 = vunpack.c.h.b16 %v86
    %v365 = vunpack.c.l.b16 %v87
    %v366 = vunpack.c.h.b16 %v87
    %v367 = vunpack.c.l.b16 %v88
    %v368 = vunpack.c.h.b16 %v88
    %v369 = vunpack.c.l.b16 %v89
    %v370 = vunpack.c.h.b16 %v89
    %v371 = vunpack.c.l.b16 %v90
    %v372 = vunpack.c.h.b16 %v90
    %v373 = vunpack.c.l.b16 %v91
    %v374 = vunpack.c.h.b16 %v91
    %v375 = vunpack.c.l.b16 %v92
    %v376 = vunpack.c.h.b16 %v92
    %v377 = vunpack.c.l.b16 %v93
    %v378 = vunpack.c.h.b16 %v93
    %v379 = vunpack.c.l.b16 %v94
    %v380 = vunpack.c.h.b16 %v94
    %v381 = vunpack.c.l.b16 %v95
    %v382 = vunpack.c.h.b16 %v95
    %v383 = vunpack.c.l.b16 %v96
    %v384 = vunpack.c.h.b16 %v96
    %v385 = vunpack.c.l.b16 %v97
    %v386 = vunpack.c.h.b16 %v97
    %v387 = vunpack.c.l.b16 %v98
    %v388 = vunpack.c.h.b16 %v98
    %v389 = vunpack.c.l.b16 %v99
    %v390 = vunpack.c.h.b16 %v99
    %v391 = vunpack.c.l.b16 %v100
    %v392 = vunpack.c.h.b16 %v100
    %v393 = vunpack.c.l.b16 %v101
    %v394 = vunpack.c.h.b16 %v101
    %v395 = vunpack.c.l.b16 %v102
    %v396 = vunpack.c.h.b16 %v102
    %v397 = vunpack.c.l.b16 %v103
    %v398 = vunpack.c.h.b16 %v103
    %v399 = vunpack.c.l.b16 %v104
    %v400 = vunpack.c.h.b16 %v104
    %v401 = vunpack.c.l.b16 %v105
    %v402 = vunpack.c.h.b16 %v105
    %v403 = vunpack.c.l.b16 %v106
    %v404 = vunpack.c.h.b16 %v106
    %v405 = vunpack.c.l.b16 %v107
    %v406 = vunpack.c.h.b16 %v107
    %v407 = vunpack.c.l.b16 %v108
    %v408 = vunpack.c.h.b16 %v108
    %v409 = vunpack.c.l.b16 %v109
    %v410 = vunpack.c.h.b16 %v109
    %v411 = vunpack.c.l.b16 %v110
    %v412 = vunpack.c.h.b16 %v110
    %v413 = vunpack.c.l.b16 %v111
    %v414 = vunpack.c.h.b16 %v111
    %v415 = vunpack.c.l.b16 %v112
    %v416 = vunpack.c.h.b16 %v112
    %v417 = vunpack.c.l.b16 %v113
    %v418 = vunpack.c.h.b16 %v113
    %v419 = vunpack.c.l.b16 %v114
    %v420 = vunpack.c.h.b16 %v114
    %v421 = vunpack.c.l.b16 %v115
    %v422 = vunpack.c.h.b16 %v115
    %v423 = vunpack.c.l.b16 %v116
    %v424 = vunpack.c.h.b16 %v116
    %v425 = vunpack.c.l.b16 %v117
    %v426 = vunpack.c.h.b16 %v117
    %v427 = vunpack.c.l.b16 %v118
    %v428 = vunpack.c.h.b16 %v118
    %v429 = vunpack.c.l.b16 %v119
    %v430 = vunpack.c.h.b16 %v119
    %v431 = vunpack.c.l.b16 %v120
    %v432 = vunpack.c.h.b16 %v120
    %v433 = vunpack.c.l.b16 %v121
    %v434 = vunpack.c.h.b16 %v121
    %v435 = vunpack.c.l.b16 %v122
    %v436 = vunpack.c.h.b16 %v122
    %v437 = vunpack.c.l.b16 %v123
    %v438 = vunpack.c.h.b16 %v123
    %v439 = vunpack.c.l.b16 %v124
    %v440 = vunpack.c.h.b16 %v124
    %v441 = vunpack.c.l.b16 %v125
    %v442 = vunpack.c.h.b16 %v125
    %v443 = vunpack.c.l.b16 %v126
    %v444 = vunpack.c.h.b16 %v126
    %v445 = vunpack.c.l.b16 %v127
    %v446 = vunpack.c.h.b16 %v127
    %v447 = vunpack.c.l.b16 %v128
    %v448 = vunpack.c.h.b16 %v128
    %v449 = vunpack.c.l.b16 %v129
    %v450 = vunpack.c.h.b16 %v129
    %v451 = vunpack.c.l.b16 %v130
    %v452 = vunpack.c.h.b16 %v130
    %v453 = vunpack.c.l.b16 %v131
    %v454 = vunpack.c.h.b16 %v131
    %v455 = vunpack.c.l.b16 %v132
    %v456 = vunpack.c.h.b16 %v132
    %v457 = vunpack.c.l.b16 %v133
    %v458 = vunpack.c.h.b16 %v133
    %v459 = vunpack.c.l.b16 %v134
    %v460 = vunpack.c.h.b16 %v134
    %v461 = vunpack.c.l.b16 %v135
    %v462 = vunpack.c.h.b16 %v135
    %v463 = vunpack.c.l.b16 %v136
    %v464 = vunpack.c.h.b16 %v136
    %v465 = vunpack.c.l.b16 %v137
    %v466 = vunpack.c.h.b16 %v137
    %v467 = vunpack.c.l.b16 %v138
    %v468 = vunpack.c.h.b16 %v138
    %v469 = vunpack.c.l.b16 %v139
    %v470 = vunpack.c.h.b16 %v139
    %v471 = vunpack.c.l.b16 %v140
    %v472 = vunpack.c.h.b16 %v140
    %v473 = vunpack.c.l.b16 %v141
    %v474 = vunpack.c.h.b16 %v141
    %v475 = vunpack.c.l.b16 %v142
    %v476 = vunpack.c.h.b16 %v142
    %v477 = vunpack.c.l.b16 %v143
    %v478 = vunpack.c.h.b16 %v143
    %v479 = vunpack.c.l.b16 %v144
    %v480 = vunpack.c.h.b16 %v144
    %v481 = vunpack.c.l.b16 %v145
    %v482 = vunpack.c.h.b16 %v145
    %v483 = vunpack.c.l.b16 %v146
    %v484 = vunpack.c.h.b16 %v146
    %v485 = vunpack.c.l.b16 %v147
    %v486 = vunpack.c.h.b16 %v147
    %v487 = vunpack.c.l.b16 %v148
    %v488 = vunpack.c.h.b16 %v148
    %v489 = vunpack.c.l.b16 %v149
    %v490 = vunpack.c.h.b16 %v149
    %v491 = vunpack.c.l.b16 %v150
    %v492 = vunpack.c.h.b16 %v150
    %v493 = vunpack.c.l.b16 %v151
    %v494 = vunpack.c.h.b16 %v151
    %v495 = vunpack.c.l.b16 %v152
    %v496 = vunpack.c.h.b16 %v152
    %v497 = vunpack.c.l.b16 %v153
    %v498 = vunpack.c.h.b16 %v153
    %v499 = vunpack.c.l.b16 %v154
    %v500 = vunpack.c.h.b16 %v154
    %v501 = vunpack.c.l.b16 %v155
    %v502 = vunpack.c.h.b16 %v155
    %v503 = vunpack.c.l.b16 %v156
    %v504 = vunpack.c.h.b16 %v156
    %v505 = vunpack.c.l.b16 %v157
    %v506 = vunpack.c.h.b16 %v157
    %v507 = vunpack.c.l.b16 %v158
    %v508 = vunpack.c.h.b16 %v158
    %v509 = vunpack.c.l.b16 %v159
    %v510 = vunpack.c.h.b16 %v159
    %v511 = vunpack.c.l.b16 %v160
    %v512 = vunpack.c.h.b16 %v160
    %v513 = vunpack.c.l.b16 %v161
    %v514 = vunpack.c.h.b16 %v161
    %v515 = vunpack.c.l.b16 %v162
    %v516 = vunpack.c.h.b16 %v162
    %v517 = vunpack.c.l.b16 %v163
    %v518 = vunpack.c.h.b16 %v163
    %v519 = vunpack.c.l.b16 %v164
    %v520 = vunpack.c.h.b16 %v164
    %v521 = vunpack.c.l.b16 %v165
    %v522 = vunpack.c.h.b16 %v165
    %v523 = vunpack.c.l.b16 %v166
    %v524 = vunpack.c.h.b16 %v166
    %v525 = vunpack.c.l.b16 %v167
    %v526 = vunpack.c.h.b16 %v167
    %v527 = vunpack.c.l.b16 %v168
    %v528 = vunpack.c.h.b16 %v168
    %v529 = vunpack.c.l.b16 %v169
    %v530 = vunpack.c.h.b16 %v169
    %v531 = vunpack.c.l.b16 %v170
    %v532 = vunpack.c.h.b16 %v170
    %v533 = vunpack.c.l.b16 %v171
    %v534 = vunpack.c.h.b16 %v171
    %v535 = vunpack.c.l.b16 %v172
    %v536 = vunpack.c.h.b16 %v172
    %v537 = vunpack.c.l.b16 %v173
    %v538 = vunpack.c.h.b16 %v173
    %v539 = vunpack.c.l.b16 %v174
    %v540 = vunpack.c.h.b16 %v174
    %v541 = vunpack.c.l.b16 %v175
    %v542 = vunpack.c.h.b16 %v175
    %v543 = vunpack.c.l.b16 %v176
    %v544 = vunpack.c.h.b16 %v176
    %v545 = vunpack.c.l.b16 %v177
    %v546 = vunpack.c.h.b16 %v177
    %v547 = vunpack.c.l.b16 %v178
    %v548 = vunpack.c.h.b16 %v178
    %v549 = vunpack.c.l.b16 %v179
    %v550 = vunpack.c.h.b16 %v179
    %v551 = vunpack.c.l.b16 %v180
    %v552 = vunpack.c.h.b16 %v180
    %v553 = vunpack.c.l.b16 %v181
    %v554 = vunpack.c.h.b16 %v181
    %v555 = vunpack.c.l.b16 %v182
    %v556 = vunpack.c.h.b16 %v182
    %v557 = vunpack.c.l.b16 %v183
    %v558 = vunpack.c.h.b16 %v183
    %v559 = vunpack.c.l.b16 %v184
    %v560 = vunpack.c.h.b16 %v184
    %v561 = vunpack.c.l.b16 %v185
    %v562 = vunpack.c.h.b16 %v185
    %v563 = vunpack.c.l.b16 %v186
    %v564 = vunpack.c.h.b16 %v186
    %v565 = vunpack.c.l.b16 %v187
    %v566 = vunpack.c.h.b16 %v187
    %v567 = vunpack.c.l.b16 %v188
    %v568 = vunpack.c.h.b16 %v188
    %v569 = vunpack.c.l.b16 %v189
    %v570 = vunpack.c.h.b16 %v189
    %v571 = vunpack.c.l.b16 %v190
    %v572 = vunpack.c.h.b16 %v190
    %v573 = vunpack.c.l.b16 %v191
    %v574 = vunpack.c.h.b16 %v191
    %v575 = vunpack.c.l.b16 %v192
    %v576 = vunpack.c.h.b16 %v192
    %v577 = vunpack.c.l.b16 %v193
    %v578 = vunpack.c.h.b16 %v193
    %v579 = vunpack.c.l.b16 %v194
    %v580 = vunpack.c.h.b16 %v194
    %v581 = vunpack.c.l.b16 %v195
    %v582 = vunpack.c.h.b16 %v195
    %v583 = vunpack.c.l.b16 %v196
    %v584 = vunpack.c.h.b16 %v196
    %v585 = vunpack.c.l.b16 %v197
    %v586 = vunpack.c.h.b16 %v197
    %v587 = vunpack.c.l.b16 %v198
    %v588 = vunpack.c.h.b16 %v198
    %v589 = vunpack.c.l.b16 %v199
    %v590 = vunpack.c.h.b16 %v199
    %v591 = vunpack.c.l.b16 %v200
    %v592 = vunpack.c.h.b16 %v200
    %v593 = vunpack.c.l.b16 %v201
    %v594 = vunpack.c.h.b16 %v201
    %v595 = vunpack.c.l.b16 %v202
    %v596 = vunpack.c.h.b16 %v202
    %v597 = vunpack.c.l.b16 %v203
    %v598 = vunpack.c.h.b16 %v203
    %v599 = vunpack.c.l.b16 %v204
    %v600 = vunpack.c.h.b16 %v204
    %v601 = vpack.c.b16 %v347, %v345
    %v602 = vpack.c.b16 %v348, %v346
    %v603 = vpack.c.b16 %v351, %v349
    %v604 = vpack.c.b16 %v352, %v350
    %v605 = vpack.c.b16 %v355, %v353
    %v606 = vpack.c.b16 %v356, %v354
    %v607 = vpack.c.b16 %v359, %v357
    %v608 = vpack.c.b16 %v360, %v358
    %v609 = vpack.c.b16 %v363, %v361
    %v610 = vpack.c.b16 %v364, %v362
    %v611 = vpack.c.b16 %v367, %v365
    %v612 = vpack.c.b16 %v368, %v366
    %v613 = vpack.c.b16 %v371, %v369
    %v614 = vpack.c.b16 %v372, %v370
    %v615 = vpack.c.b16 %v375, %v373
    %v616 = vpack.c.b16 %v376, %v374
    %v617 = vpack.c.b16 %v379, %v377
    %v618 = vpack.c.b16 %v380, %v378
    %v619 = vpack.c.b16 %v383, %v381
    %v620 = vpack.c.b16 %v384, %v382
    %v621 = vpack.c.b16 %v387, %v385
    %v622 = vpack.c.b16 %v388, %v386
    %v623 = vpack.c.b16 %v391, %v389
    %v624 = vpack.c.b16 %v392, %v390
    %v625 = vpack.c.b16 %v395, %v393
    %v626 = vpack.c.b16 %v396, %v394
    %v627 = vpack.c.b16 %v399, %v397
    %v628 = vpack.c.b16 %v400, %v398
    %v629 = vpack.c.b16 %v403, %v401
    %v630 = vpack.c.b16 %v404, %v402
    %v631 = vpack.c.b16 %v407, %v405
    %v632 = vpack.c.b16 %v408, %v406
    %v633 = vpack.c.b16 %v411, %v409
    %v634 = vpack.c.b16 %v412, %v410
    %v635 = vpack.c.b16 %v415, %v413
    %v636 = vpack.c.b16 %v416, %v414
    %v637 = vpack.c.b16 %v419, %v417
    %v638 = vpack.c.b16 %v420, %v418
    %v639 = vpack.c.b16 %v423, %v421
    %v640 = vpack.c.b16 %v424, %v422
    %v641 = vpack.c.b16 %v427, %v425
    %v642 = vpack.c.b16 %v428, %v426
    %v643 = vpack.c.b16 %v431, %v429
    %v644 = vpack.c.b16 %v432, %v430
    %v645 = vpack.c.b16 %v435, %v433
    %v646 = vpack.c.b16 %v436, %v434
    %v647 = vpack.c.b16 %v439, %v437
    %v648 = vpack.c.b16 %v440, %v438
    %v649 = vpack.c.b16 %v443, %v441
    %v650 = vpack.c.b16 %v444, %v442
    %v651 = vpack.c.b16 %v447, %v445
    %v652 = vpack.c.b16 %v448, %v446
    %v653 = vpack.c.b16 %v451, %v449
    %v654 = vpack.c.b16 %v452, %v450
    %v655 = vpack.c.b16 %v455, %v453
    %v656 = vpack.c.b16 %v456, %v454
    %v657 = vpack.c.b16 %v459, %v457
    %v658 = vpack.c.b16 %v460, %v458
    %v659 = vpack.c.b16 %v463, %v461
    %v660 = vpack.c.b16 %v464, %v462
    %v661 = vpack.c.b16 %v467, %v465
    %v662 = vpack.c.b16 %v468, %v466
    %v663 = vpack.c.b16 %v471, %v469
    %v664 = vpack.c.b16 %v472, %v470
    %v665 = vpack.c.b16 %v475, %v473
    %v666 = vpack.c.b16 %v476, %v474
    %v667 = vpack.c.b16 %v479, %v477
    %v668 = vpack.c.b16 %v480, %v478
    %v669 = vpack.c.b16 %v483, %v481
    %v670 = vpack.c.b16 %v484, %v482
    %v671 = vpack.c.b16 %v487, %v485
    %v672 = vpack.c.b16 %v488, %v486
    %v673 = vpack.c.b16 %v491, %v489
    %v674 = vpack.c.b16 %v492, %v490
    %v675 = vpack.c.b16 %v495, %v493
    %v676 = vpack.c.b16 %v496, %v494
    %v677 = vpack.c.b16 %v499, %v497
    %v678 = vpack.c.b16 %v500, %v498
    %v679 = vpack.c.b16 %v503, %v501
    %v680 = vpack.c.b16 %v504, %v502
    %v681 = vpack.c.b16 %v507, %v505
    %v682 = vpack.c.b16 %v508, %v506
    %v683 = vpack.c.b16 %v511, %v509
    %v684 = vpack.c.b16 %v512, %v510
    %v685 = vpack.c.b16 %v515, %v513
    %v686 = vpack.c.b16 %v516, %v514
    %v687 = vpack.c.b16 %v519, %v517
    %v688 = vpack.c.b16 %v520, %v518
    %v689 = vpack.c.b16 %v523, %v521
    %v690 = vpack.c.b16 %v524, %v522
    %v691 = vpack.c.b16 %v527, %v525
    %v692 = vpack.c.b16 %v528, %v526
    %v693 = vpack.c.b16 %v531, %v529
    %v694 = vpack.c.b16 %v532, %v530
    %v695 = vpack.c.b16 %v535, %v533
    %v696 = vpack.c.b16 %v536, %v534
    %v697 = vpack.c.b16 %v539, %v537
    %v698 = vpack.c.b16 %v540, %v538
    %v699 = vpack.c.b16 %v543, %v541
    %v700 = vpack.c.b16 %v544, %v542
    %v701 = vpack.c.b16 %v547, %v545
    %v702 = vpack.c.b16 %v548, %v546
    %v703 = vpack.c.b16 %v551, %v549
    %v704 = vpack.c.b16 %v552, %v550
    %v705 = vpack.c.b16 %v555, %v553
    %v706 = vpack.c.b16 %v556, %v554
    %v707 = vpack.c.b16 %v559, %v557
    %v708 = vpack.c.b16 %v560, %v558
    %v709 = vpack.c.b16 %v563, %v561
    %v710 = vpack.c.b16 %v564, %v562
    %v711 = vpack.c.b16 %v567, %v565
    %v712 = vpack.c.b16 %v568, %v566
    %v713 = vpack.c.b16 %v571, %v569
    %v714 = vpack.c.b16 %v572, %v570
    %v715 = vpack.c.b16 %v575, %v573
    %v716 = vpack.c.b16 %v576, %v574
    %v717 = vpack.c.b16 %v579, %v577
    %v718 = vpack.c.b16 %v580, %v578
    %v719 = vpack.c.b16 %v583, %v581
    %v720 = vpack.c.b16 %v584, %v582
    %v721 = vpack.c.b16 %v587, %v585
    %v722 = vpack.c.b16 %v588, %v586
    %v723 = vpack.c.b16 %v591, %v589
    %v724 = vpack.c.b16 %v592, %v590
    %v725 = vpack.c.b16 %v595, %v593
    %v726 = vpack.c.b16 %v596, %v594
    %v727 = vpack.c.b16 %v599, %v597
    %v728 = vpack.c.b16 %v600, %v598
    %857 = vmatprep.subr.bf16.mxu0 %v616
    %858 = vmatpush1.bf16.msra.mxu0 %v615
    %859 = vmatprep.subr.bf16.mxu0 %v614
    %860 = vmatpush1.bf16.msra.mxu0 %v613
    %861 = vmatprep.subr.bf16.mxu0 %v612
    %862 = vmatpush1.bf16.msra.mxu0 %v611
    %863 = vmatprep.subr.bf16.mxu0 %v610
    %864 = vmatpush1.bf16.msra.mxu0 %v609
    %865 = vmatprep.subr.bf16.mxu0 %v608
    %866 = vmatpush1.bf16.msra.mxu0 %v607
    %867 = vmatprep.subr.bf16.mxu0 %v606
    %868 = vmatpush1.bf16.msra.mxu0 %v605
    %869 = vmatprep.subr.bf16.mxu0 %v604
    %870 = vmatpush1.bf16.msra.mxu0 %v603
    %871 = vmatprep.subr.bf16.mxu0 %v602
    %872 = vmatpush1.bf16.msra.mxu0 %v601
    %873 = vmatprep.subr.bf16.mxu0 %v632
    %874 = vmatpush2.bf16.msra.mxu0 %v631
    %875 = vmatprep.subr.bf16.mxu0 %v630
    %876 = vmatpush2.bf16.msra.mxu0 %v629
    %877 = vmatprep.subr.bf16.mxu0 %v628
    %878 = vmatpush2.bf16.msra.mxu0 %v627
    %879 = vmatprep.subr.bf16.mxu0 %v626
    %880 = vmatpush2.bf16.msra.mxu0 %v625
    %881 = vmatprep.subr.bf16.mxu0 %v624
    %882 = vmatpush2.bf16.msra.mxu0 %v623
    %883 = vmatprep.subr.bf16.mxu0 %v622
    %884 = vmatpush2.bf16.msra.mxu0 %v621
    %885 = vmatprep.subr.bf16.mxu0 %v620
    %886 = vmatpush2.bf16.msra.mxu0 %v619
    %887 = vmatprep.subr.bf16.mxu0 %v618
    %888 = vmatpush2.bf16.msra.mxu0 %v617
    %889 = vmatprep.mubr.bf16.mxu0 %v70
    %890 = vmatmul.mubr.bf16.gmra.mxu0 %v69
    %v891 = vpop.f32.mrf.mxu0
    %v892 = vadd.f32 %v210, %v891
    %v893 = vpop.f32.mrf.mxu0
    %v894 = vadd.f32 %v214, %v893
    %v895 = vpop.f32.mrf.mxu0
    %v896 = vpop.f32.mrf.mxu0
    %897 = vdwg.mxu0
    %898 = vmatprep.subr.bf16.mxu0 %v648
    %899 = vmatpush1.bf16.msra.mxu0 %v647
    %900 = vmatprep.subr.bf16.mxu0 %v646
    %901 = vmatpush1.bf16.msra.mxu0 %v645
    %902 = vmatprep.subr.bf16.mxu0 %v644
    %903 = vmatpush1.bf16.msra.mxu0 %v643
    %904 = vmatprep.subr.bf16.mxu0 %v642
    %905 = vmatpush1.bf16.msra.mxu0 %v641
    %906 = vmatprep.subr.bf16.mxu0 %v640
    %907 = vmatpush1.bf16.msra.mxu0 %v639
    %908 = vmatprep.subr.bf16.mxu0 %v638
    %909 = vmatpush1.bf16.msra.mxu0 %v637
    %910 = vmatprep.subr.bf16.mxu0 %v636
    %911 = vmatpush1.bf16.msra.mxu0 %v635
    %912 = vmatprep.subr.bf16.mxu0 %v634
    %913 = vmatpush1.bf16.msra.mxu0 %v633
    %914 = vmatprep.subr.bf16.mxu0 %v664
    %915 = vmatpush2.bf16.msra.mxu0 %v663
    %916 = vmatprep.subr.bf16.mxu0 %v662
    %917 = vmatpush2.bf16.msra.mxu0 %v661
    %918 = vmatprep.subr.bf16.mxu0 %v660
    %919 = vmatpush2.bf16.msra.mxu0 %v659
    %920 = vmatprep.subr.bf16.mxu0 %v658
    %921 = vmatpush2.bf16.msra.mxu0 %v657
    %922 = vmatprep.subr.bf16.mxu0 %v656
    %923 = vmatpush2.bf16.msra.mxu0 %v655
    %924 = vmatprep.subr.bf16.mxu0 %v654
    %925 = vmatpush2.bf16.msra.mxu0 %v653
    %926 = vmatprep.subr.bf16.mxu0 %v652
    %927 = vmatpush2.bf16.msra.mxu0 %v651
    %928 = vmatprep.subr.bf16.mxu0 %v650
    %929 = vmatpush2.bf16.msra.mxu0 %v649
    %930 = vmatprep.mubr.bf16.mxu0 %v72
    %931 = vmatmul.mubr.bf16.gmra.mxu0 %v71
    %v932 = vpop.f32.mrf.mxu0
    %v933 = vadd.f32 %v892, %v932
    %v934 = vpop.f32.mrf.mxu0
    %v935 = vadd.f32 %v894, %v934
    %v936 = vpop.f32.mrf.mxu0
    %v937 = vpop.f32.mrf.mxu0
    %938 = vdwg.mxu0
    %939 = vmatprep.subr.bf16.mxu0 %v680
    %940 = vmatpush1.bf16.msra.mxu0 %v679
    %941 = vmatprep.subr.bf16.mxu0 %v678
    %942 = vmatpush1.bf16.msra.mxu0 %v677
    %943 = vmatprep.subr.bf16.mxu0 %v676
    %944 = vmatpush1.bf16.msra.mxu0 %v675
    %945 = vmatprep.subr.bf16.mxu0 %v674
    %946 = vmatpush1.bf16.msra.mxu0 %v673
    %947 = vmatprep.subr.bf16.mxu0 %v672
    %948 = vmatpush1.bf16.msra.mxu0 %v671
    %949 = vmatprep.subr.bf16.mxu0 %v670
    %950 = vmatpush1.bf16.msra.mxu0 %v669
    %951 = vmatprep.subr.bf16.mxu0 %v668
    %952 = vmatpush1.bf16.msra.mxu0 %v667
    %953 = vmatprep.subr.bf16.mxu0 %v666
    %954 = vmatpush1.bf16.msra.mxu0 %v665
    %955 = vmatprep.subr.bf16.mxu0 %v696
    %956 = vmatpush2.bf16.msra.mxu0 %v695
    %957 = vmatprep.subr.bf16.mxu0 %v694
    %958 = vmatpush2.bf16.msra.mxu0 %v693
    %959 = vmatprep.subr.bf16.mxu0 %v692
    %960 = vmatpush2.bf16.msra.mxu0 %v691
    %961 = vmatprep.subr.bf16.mxu0 %v690
    %962 = vmatpush2.bf16.msra.mxu0 %v689
    %963 = vmatprep.subr.bf16.mxu0 %v688
    %964 = vmatpush2.bf16.msra.mxu0 %v687
    %965 = vmatprep.subr.bf16.mxu0 %v686
    %966 = vmatpush2.bf16.msra.mxu0 %v685
    %967 = vmatprep.subr.bf16.mxu0 %v684
    %968 = vmatpush2.bf16.msra.mxu0 %v683
    %969 = vmatprep.subr.bf16.mxu0 %v682
    %970 = vmatpush2.bf16.msra.mxu0 %v681
    %971 = vmatprep.mubr.bf16.mxu0 %v74
    %972 = vmatmul.mubr.bf16.gmra.mxu0 %v73
    %v973 = vpop.f32.mrf.mxu0
    %v974 = vadd.f32 %v933, %v973
    %v975 = vpop.f32.mrf.mxu0
    %v976 = vadd.f32 %v935, %v975
    %v977 = vpop.f32.mrf.mxu0
    %v978 = vpop.f32.mrf.mxu0
    %979 = vdwg.mxu0
    %980 = vmatprep.subr.bf16.mxu0 %v712
    %981 = vmatpush1.bf16.msra.mxu0 %v711
    %982 = vmatprep.subr.bf16.mxu0 %v710
    %983 = vmatpush1.bf16.msra.mxu0 %v709
    %984 = vmatprep.subr.bf16.mxu0 %v708
    %985 = vmatpush1.bf16.msra.mxu0 %v707
    %986 = vmatprep.subr.bf16.mxu0 %v706
    %987 = vmatpush1.bf16.msra.mxu0 %v705
    %988 = vmatprep.subr.bf16.mxu0 %v704
    %989 = vmatpush1.bf16.msra.mxu0 %v703
    %990 = vmatprep.subr.bf16.mxu0 %v702
    %991 = vmatpush1.bf16.msra.mxu0 %v701
    %992 = vmatprep.subr.bf16.mxu0 %v700
    %993 = vmatpush1.bf16.msra.mxu0 %v699
    %994 = vmatprep.subr.bf16.mxu0 %v698
    %995 = vmatpush1.bf16.msra.mxu0 %v697
    %996 = vmatprep.subr.bf16.mxu0 %v728
    %997 = vmatpush2.bf16.msra.mxu0 %v727
    %998 = vmatprep.subr.bf16.mxu0 %v726
    %999 = vmatpush2.bf16.msra.mxu0 %v725
    %1000 = vmatprep.subr.bf16.mxu0 %v724
    %1001 = vmatpush2.bf16.msra.mxu0 %v723
    %1002 = vmatprep.subr.bf16.mxu0 %v722
    %1003 = vmatpush2.bf16.msra.mxu0 %v721
    %1004 = vmatprep.subr.bf16.mxu0 %v720
    %1005 = vmatpush2.bf16.msra.mxu0 %v719
    %1006 = vmatprep.subr.bf16.mxu0 %v718
    %1007 = vmatpush2.bf16.msra.mxu0 %v717
    %1008 = vmatprep.subr.bf16.mxu0 %v716
    %1009 = vmatpush2.bf16.msra.mxu0 %v715
    %1010 = vmatprep.subr.bf16.mxu0 %v714
    %1011 = vmatpush2.bf16.msra.mxu0 %v713
    %1012 = vmatprep.mubr.bf16.mxu0 %v76
    %1013 = vmatmul.mubr.bf16.gmra.mxu0 %v75
    %v1014 = vpop.f32.mrf.mxu0
    %v1015 = vadd.f32 %v974, %v1014
    %v1016 = vpop.f32.mrf.mxu0
    %v1017 = vadd.f32 %v976, %v1016
    %v1018 = vpop.f32.mrf.mxu0
    %v1019 = vpop.f32.mrf.mxu0
    %1020 = vdwg.mxu0
    %v1021 = vmax.f32 %v1015, 0.0
    %v1022 = vmax.f32 %v1017, 0.0
    %v1023 = vpack.c.bf16 %v1021, %v1021
    %v1024 = vpack.c.bf16 %v1022, %v1022
    %v1025 = vld [vmem:[%s3] sm:$0xf]
    %v1026 = vld [vmem:[%s3 + $0x4] sm:$0xf]
    %v1027 = vld [vmem:[%s3 + $0x8] sm:$0xf]
    %v1028 = vld [vmem:[%s3 + $0xc] sm:$0xf]
    %v1029 = vld [vmem:[%s3 + $0x10] sm:$0xf]
    %v1030 = vld [vmem:[%s3 + $0x14] sm:$0xf]
    %v1031 = vld [vmem:[%s3 + $0x18] sm:$0xf]
    %v1032 = vld [vmem:[%s3 + $0x1c] sm:$0xf]
    %v1033 = vld [vmem:[%s3 + $0x20] sm:$0xf]
    %v1034 = vld [vmem:[%s3 + $0x24] sm:$0xf]
    %v1035 = vld [vmem:[%s3 + $0x28] sm:$0xf]
    %v1036 = vld [vmem:[%s3 + $0x2c] sm:$0xf]
    %v1037 = vld [vmem:[%s3 + $0x30] sm:$0xf]
    %v1038 = vld [vmem:[%s3 + $0x34] sm:$0xf]
    %v1039 = vld [vmem:[%s3 + $0x38] sm:$0xf]
    %v1040 = vld [vmem:[%s3 + $0x3c] sm:$0xf]
    %v1041 = vld [vmem:[%s3 + $0x40] sm:$0xf]
    %v1042 = vld [vmem:[%s3 + $0x44] sm:$0xf]
    %v1043 = vld [vmem:[%s3 + $0x48] sm:$0xf]
    %v1044 = vld [vmem:[%s3 + $0x4c] sm:$0xf]
    %v1045 = vld [vmem:[%s3 + $0x50] sm:$0xf]
    %v1046 = vld [vmem:[%s3 + $0x54] sm:$0xf]
    %v1047 = vld [vmem:[%s3 + $0x58] sm:$0xf]
    %v1048 = vld [vmem:[%s3 + $0x5c] sm:$0xf]
    %v1049 = vld [vmem:[%s3 + $0x60] sm:$0xf]
    %v1050 = vld [vmem:[%s3 + $0x64] sm:$0xf]
    %v1051 = vld [vmem:[%s3 + $0x68] sm:$0xf]
    %v1052 = vld [vmem:[%s3 + $0x6c] sm:$0xf]
    %v1053 = vld [vmem:[%s3 + $0x70] sm:$0xf]
    %v1054 = vld [vmem:[%s3 + $0x74] sm:$0xf]
    %v1055 = vld [vmem:[%s3 + $0x78] sm:$0xf]
    %v1056 = vld [vmem:[%s3 + $0x7c] sm:$0xf]
    %v1057 = vld [vmem:[%s4] sm:$0x1]
    %v1059 = vlaneseq
    %v1060 = vshrl.u32 %v1059, 7
    %v1061 = vsub.s32 0, %v1060
    %v1062 = vrot.slane %v1057, %v1061
    %v1096 = vunpack.c.l.b16 %v1025
    %v1097 = vunpack.c.l.b16 %v1026
    %v1098 = vunpack.c.l.b16 %v1027
    %v1099 = vunpack.c.l.b16 %v1028
    %v1100 = vunpack.c.l.b16 %v1029
    %v1101 = vunpack.c.l.b16 %v1030
    %v1102 = vunpack.c.l.b16 %v1031
    %v1103 = vunpack.c.l.b16 %v1032
    %v1104 = vunpack.c.l.b16 %v1033
    %v1105 = vunpack.c.l.b16 %v1034
    %v1106 = vunpack.c.l.b16 %v1035
    %v1107 = vunpack.c.l.b16 %v1036
    %v1108 = vunpack.c.l.b16 %v1037
    %v1109 = vunpack.c.l.b16 %v1038
    %v1110 = vunpack.c.l.b16 %v1039
    %v1111 = vunpack.c.l.b16 %v1040
    %v1112 = vunpack.c.l.b16 %v1041
    %v1113 = vunpack.c.l.b16 %v1042
    %v1114 = vunpack.c.l.b16 %v1043
    %v1115 = vunpack.c.l.b16 %v1044
    %v1116 = vunpack.c.l.b16 %v1045
    %v1117 = vunpack.c.l.b16 %v1046
    %v1118 = vunpack.c.l.b16 %v1047
    %v1119 = vunpack.c.l.b16 %v1048
    %v1120 = vunpack.c.l.b16 %v1049
    %v1121 = vunpack.c.l.b16 %v1050
    %v1122 = vunpack.c.l.b16 %v1051
    %v1123 = vunpack.c.l.b16 %v1052
    %v1124 = vunpack.c.l.b16 %v1053
    %v1125 = vunpack.c.l.b16 %v1054
    %v1126 = vunpack.c.l.b16 %v1055
    %v1127 = vunpack.c.l.b16 %v1056
    %v1128 = vpack.c.b16 %v1097, %v1096
    %v1129 = vpack.c.b16 %v1099, %v1098
    %v1130 = vpack.c.b16 %v1101, %v1100
    %v1131 = vpack.c.b16 %v1103, %v1102
    %v1132 = vpack.c.b16 %v1105, %v1104
    %v1133 = vpack.c.b16 %v1107, %v1106
    %v1134 = vpack.c.b16 %v1109, %v1108
    %v1135 = vpack.c.b16 %v1111, %v1110
    %v1136 = vpack.c.b16 %v1113, %v1112
    %v1137 = vpack.c.b16 %v1115, %v1114
    %v1138 = vpack.c.b16 %v1117, %v1116
    %v1139 = vpack.c.b16 %v1119, %v1118
    %v1140 = vpack.c.b16 %v1121, %v1120
    %v1141 = vpack.c.b16 %v1123, %v1122
    %v1142 = vpack.c.b16 %v1125, %v1124
    %v1143 = vpack.c.b16 %v1127, %v1126
    %1160 = vmatprep.subr.bf16.mxu0 0
    %1161 = vmatpush1.bf16.msra.mxu0 %v1135
    %1162 = vmatprep.subr.bf16.mxu0 0
    %1163 = vmatpush1.bf16.msra.mxu0 %v1134
    %1164 = vmatprep.subr.bf16.mxu0 0
    %1165 = vmatpush1.bf16.msra.mxu0 %v1133
    %1166 = vmatprep.subr.bf16.mxu0 0
    %1167 = vmatpush1.bf16.msra.mxu0 %v1132
    %1168 = vmatprep.subr.bf16.mxu0 0
    %1169 = vmatpush1.bf16.msra.mxu0 %v1131
    %1170 = vmatprep.subr.bf16.mxu0 0
    %1171 = vmatpush1.bf16.msra.mxu0 %v1130
    %1172 = vmatprep.subr.bf16.mxu0 0
    %1173 = vmatpush1.bf16.msra.mxu0 %v1129
    %1174 = vmatprep.subr.bf16.mxu0 0
    %1175 = vmatpush1.bf16.msra.mxu0 %v1128
    %1176 = vmatprep.subr.bf16.mxu0 0
    %1177 = vmatpush2.bf16.msra.mxu0 %v1143
    %1178 = vmatprep.subr.bf16.mxu0 0
    %1179 = vmatpush2.bf16.msra.mxu0 %v1142
    %1180 = vmatprep.subr.bf16.mxu0 0
    %1181 = vmatpush2.bf16.msra.mxu0 %v1141
    %1182 = vmatprep.subr.bf16.mxu0 0
    %1183 = vmatpush2.bf16.msra.mxu0 %v1140
    %1184 = vmatprep.subr.bf16.mxu0 0
    %1185 = vmatpush2.bf16.msra.mxu0 %v1139
    %1186 = vmatprep.subr.bf16.mxu0 0
    %1187 = vmatpush2.bf16.msra.mxu0 %v1138
    %1188 = vmatprep.subr.bf16.mxu0 0
    %1189 = vmatpush2.bf16.msra.mxu0 %v1137
    %1190 = vmatprep.subr.bf16.mxu0 0
    %1191 = vmatpush2.bf16.msra.mxu0 %v1136
    %1192 = vmatprep.mubr.bf16.mxu0 %v1024
    %1193 = vmatmul.mubr.bf16.gmra.mxu0 %v1023
    %v1194 = vpop.f32.mrf.mxu0
    %v1195 = vadd.f32 %v1062, %v1194
    %v1196 = vpop.f32.mrf.mxu0
    %v1197 = vpop.f32.mrf.mxu0
    %v1198 = vpop.f32.mrf.mxu0
    %1199 = vdwg.mxu0
    %v1200 = vmax.f32 %v1195, 0.0
    %v1201 = vpack.c.bf16 %v1200, %v1200
    %v1202 = vld [vmem:[%s5] sm:$0xf]
    %v1203 = vld [vmem:[%s5 + $0x4] sm:$0xf]
    %v1204 = vld [vmem:[%s5 + $0x8] sm:$0xf]
    %v1205 = vld [vmem:[%s5 + $0xc] sm:$0xf]
    %v1206 = vld [vmem:[%s5 + $0x10] sm:$0xf]
    %v1207 = vld [vmem:[%s5 + $0x14] sm:$0xf]
    %v1208 = vld [vmem:[%s5 + $0x18] sm:$0xf]
    %v1209 = vld [vmem:[%s5 + $0x1c] sm:$0xf]
    %v1210 = vld [vmem:[%s5 + $0x20] sm:$0xf]
    %v1211 = vld [vmem:[%s5 + $0x24] sm:$0xf]
    %v1212 = vld [vmem:[%s5 + $0x28] sm:$0xf]
    %v1213 = vld [vmem:[%s5 + $0x2c] sm:$0xf]
    %v1214 = vld [vmem:[%s5 + $0x30] sm:$0xf]
    %v1215 = vld [vmem:[%s5 + $0x34] sm:$0xf]
    %v1216 = vld [vmem:[%s5 + $0x38] sm:$0xf]
    %v1217 = vld [vmem:[%s5 + $0x3c] sm:$0xf]
    %v1218 = vld [vmem:[%s6] sm:$0x1]
    %v1220 = vlaneseq
    %v1221 = vshrl.u32 %v1220, 7
    %v1222 = vsub.s32 0, %v1221
    %v1223 = vrot.slane %v1218, %v1222
    %v1241 = vunpack.c.l.b16 %v1202
    %v1242 = vunpack.c.l.b16 %v1203
    %v1243 = vunpack.c.l.b16 %v1204
    %v1244 = vunpack.c.l.b16 %v1205
    %v1245 = vunpack.c.l.b16 %v1206
    %v1246 = vunpack.c.l.b16 %v1207
    %v1247 = vunpack.c.l.b16 %v1208
    %v1248 = vunpack.c.l.b16 %v1209
    %v1249 = vunpack.c.l.b16 %v1210
    %v1250 = vunpack.c.l.b16 %v1211
    %v1251 = vunpack.c.l.b16 %v1212
    %v1252 = vunpack.c.l.b16 %v1213
    %v1253 = vunpack.c.l.b16 %v1214
    %v1254 = vunpack.c.l.b16 %v1215
    %v1255 = vunpack.c.l.b16 %v1216
    %v1256 = vunpack.c.l.b16 %v1217
    %v1257 = vpack.c.b16 %v1242, %v1241
    %v1258 = vpack.c.b16 %v1244, %v1243
    %v1259 = vpack.c.b16 %v1246, %v1245
    %v1260 = vpack.c.b16 %v1248, %v1247
    %v1261 = vpack.c.b16 %v1250, %v1249
    %v1262 = vpack.c.b16 %v1252, %v1251
    %v1263 = vpack.c.b16 %v1254, %v1253
    %v1264 = vpack.c.b16 %v1256, %v1255
    %1273 = vmatprep.subr.bf16.mxu0 0
    %1274 = vmatpush1.bf16.msra.mxu0 %v1264
    %1275 = vmatprep.subr.bf16.mxu0 0
    %1276 = vmatpush1.bf16.msra.mxu0 %v1263
    %1277 = vmatprep.subr.bf16.mxu0 0
    %1278 = vmatpush1.bf16.msra.mxu0 %v1262
    %1279 = vmatprep.subr.bf16.mxu0 0
    %1280 = vmatpush1.bf16.msra.mxu0 %v1261
    %1281 = vmatprep.subr.bf16.mxu0 0
    %1282 = vmatpush1.bf16.msra.mxu0 %v1260
    %1283 = vmatprep.subr.bf16.mxu0 0
    %1284 = vmatpush1.bf16.msra.mxu0 %v1259
    %1285 = vmatprep.subr.bf16.mxu0 0
    %1286 = vmatpush1.bf16.msra.mxu0 %v1258
    %1287 = vmatprep.subr.bf16.mxu0 0
    %1288 = vmatpush1.bf16.msra.mxu0 %v1257
    %1289 = vmatprep.subr.bf16.mxu0 0
    %1290 = vmatpush2.bf16.msra.mxu0 0
    %1291 = vmatprep.subr.bf16.mxu0 0
    %1292 = vmatpush2.bf16.msra.mxu0 0
    %1293 = vmatprep.subr.bf16.mxu0 0
    %1294 = vmatpush2.bf16.msra.mxu0 0
    %1295 = vmatprep.subr.bf16.mxu0 0
    %1296 = vmatpush2.bf16.msra.mxu0 0
    %1297 = vmatprep.subr.bf16.mxu0 0
    %1298 = vmatpush2.bf16.msra.mxu0 0
    %1299 = vmatprep.subr.bf16.mxu0 0
    %1300 = vmatpush2.bf16.msra.mxu0 0
    %1301 = vmatprep.subr.bf16.mxu0 0
    %1302 = vmatpush2.bf16.msra.mxu0 0
    %1303 = vmatprep.subr.bf16.mxu0 0
    %1304 = vmatpush2.bf16.msra.mxu0 0
    %1305 = vmatprep.mubr.bf16.mxu0 0
    %1306 = vmatmul.mubr.bf16.gmra.mxu0 %v1201
    %v1307 = vpop.f32.mrf.mxu0
    %v1308 = vadd.f32 %v1223, %v1307
    %v1309 = vpop.f32.mrf.mxu0
    %v1310 = vpop.f32.mrf.mxu0
    %v1311 = vpop.f32.mrf.mxu0
    %1312 = vdwg.mxu0
    %v1313 = vmax.f32 %v1308, 0.0
    %v1314 = vpack.c.bf16 %v1313, %v1313
    %v1315 = vld [vmem:[#allocation4] sm:$0xf]
    %v1316 = vld [vmem:[#allocation4 + $0x4] sm:$0xf]
    %v1317 = vld [vmem:[#allocation4 + $0x8] sm:$0xf]
    %v1318 = vld [vmem:[#allocation4 + $0xc] sm:$0xf]
    %v1319 = vld [vmem:[#allocation4 + $0x10] sm:$0xf]
    %v1320 = vld [vmem:[#allocation4 + $0x14] sm:$0xf]
    %v1321 = vld [vmem:[#allocation4 + $0x18] sm:$0xf]
    %v1322 = vld [vmem:[#allocation4 + $0x1c] sm:$0xf]
    %v1323 = vld [vmem:[#allocation4 + $0x20] sm:$0xf]
    %v1324 = vld [vmem:[#allocation4 + $0x24] sm:$0xf]
    %v1325 = vld [vmem:[#allocation4 + $0x28] sm:$0xf]
    %v1326 = vld [vmem:[#allocation4 + $0x2c] sm:$0xf]
    %v1327 = vld [vmem:[#allocation4 + $0x30] sm:$0xf]
    %v1328 = vld [vmem:[#allocation4 + $0x34] sm:$0xf]
    %v1329 = vld [vmem:[#allocation4 + $0x38] sm:$0xf]
    %v1330 = vld [vmem:[#allocation4 + $0x3c] sm:$0xf]
    %v1331 = vld [vmem:[%s8] sm:$0x1]
    %v1333 = vlaneseq
    %v1334 = vshrl.u32 %v1333, 7
    %v1335 = vsub.s32 0, %v1334
    %v1336 = vrot.slane %v1331, %v1335
    %v1354 = vunpack.c.l.b16 %v1315
    %v1355 = vunpack.c.l.b16 %v1316
    %v1356 = vunpack.c.l.b16 %v1317
    %v1357 = vunpack.c.l.b16 %v1318
    %v1358 = vunpack.c.l.b16 %v1319
    %v1359 = vunpack.c.l.b16 %v1320
    %v1360 = vunpack.c.l.b16 %v1321
    %v1361 = vunpack.c.l.b16 %v1322
    %v1362 = vunpack.c.l.b16 %v1323
    %v1363 = vunpack.c.l.b16 %v1324
    %v1364 = vunpack.c.l.b16 %v1325
    %v1365 = vunpack.c.l.b16 %v1326
    %v1366 = vunpack.c.l.b16 %v1327
    %v1367 = vunpack.c.l.b16 %v1328
    %v1368 = vunpack.c.l.b16 %v1329
    %v1369 = vunpack.c.l.b16 %v1330
    %v1370 = vpack.c.b16 %v1355, %v1354
    %v1371 = vpack.c.b16 %v1357, %v1356
    %v1372 = vpack.c.b16 %v1359, %v1358
    %v1373 = vpack.c.b16 %v1361, %v1360
    %v1374 = vpack.c.b16 %v1363, %v1362
    %v1375 = vpack.c.b16 %v1365, %v1364
    %v1376 = vpack.c.b16 %v1367, %v1366
    %v1377 = vpack.c.b16 %v1369, %v1368
    %1386 = vmatprep.subr.bf16.mxu0 0
    %1387 = vmatpush1.bf16.msra.mxu0 %v1377
    %1388 = vmatprep.subr.bf16.mxu0 0
    %1389 = vmatpush1.bf16.msra.mxu0 %v1376
    %1390 = vmatprep.subr.bf16.mxu0 0
    %1391 = vmatpush1.bf16.msra.mxu0 %v1375
    %1392 = vmatprep.subr.bf16.mxu0 0
    %1393 = vmatpush1.bf16.msra.mxu0 %v1374
    %1394 = vmatprep.subr.bf16.mxu0 0
    %1395 = vmatpush1.bf16.msra.mxu0 %v1373
    %1396 = vmatprep.subr.bf16.mxu0 0
    %1397 = vmatpush1.bf16.msra.mxu0 %v1372
    %1398 = vmatprep.subr.bf16.mxu0 0
    %1399 = vmatpush1.bf16.msra.mxu0 %v1371
    %1400 = vmatprep.subr.bf16.mxu0 0
    %1401 = vmatpush1.bf16.msra.mxu0 %v1370
    %1402 = vmatprep.subr.bf16.mxu0 0
    %1403 = vmatpush2.bf16.msra.mxu0 0
    %1404 = vmatprep.subr.bf16.mxu0 0
    %1405 = vmatpush2.bf16.msra.mxu0 0
    %1406 = vmatprep.subr.bf16.mxu0 0
    %1407 = vmatpush2.bf16.msra.mxu0 0
    %1408 = vmatprep.subr.bf16.mxu0 0
    %1409 = vmatpush2.bf16.msra.mxu0 0
    %1410 = vmatprep.subr.bf16.mxu0 0
    %1411 = vmatpush2.bf16.msra.mxu0 0
    %1412 = vmatprep.subr.bf16.mxu0 0
    %1413 = vmatpush2.bf16.msra.mxu0 0
    %1414 = vmatprep.subr.bf16.mxu0 0
    %1415 = vmatpush2.bf16.msra.mxu0 0
    %1416 = vmatprep.subr.bf16.mxu0 0
    %1417 = vmatpush2.bf16.msra.mxu0 0
    %1418 = vmatprep.mubr.bf16.mxu0 0
    %1419 = vmatmul.mubr.bf16.gmra.mxu0 %v1314
    %v1420 = vpop.f32.mrf.mxu0
    %v1421 = vadd.f32 %v1336, %v1420
    %v1422 = vpop.f32.mrf.mxu0
    %v1423 = vpop.f32.mrf.mxu0
    %v1424 = vpop.f32.mrf.mxu0
    %1425 = vdwg.mxu0
    %1426 = vst [vmem:[%s9] sm:$0xff] %v1421
    // Predicated region
    $region46: #{_forward.1} parent=1 // pred_check
      _
    $region47: #{_forward.1} parent=1 // pred_check_branch
      %1428 = sbr.rel (0) target = $region49
    $region48: #{_forward.1} parent=1 // pred_region
      _
    $region49: #{_forward.1} parent=1 // pred_fallthru
      _
    // Predicated region
    $region50: #{_forward.1} parent=1 // pred_check
      _
    $region51: #{_forward.1} parent=1 // pred_check_branch
      %1430 = sbr.rel (0) target = $region53
    $region52: #{_forward.1} parent=1 // pred_region
      _
    $region53: #{_forward.1} parent=1 // pred_fallthru
      _
    %1431 = vsyncpa [#allocation3], 1
    %1432 = vsyncpa [#allocation5], 1

// kernel: _forward.1
$region0: #{_forward.1}
  #allocation0 [shape = 'u32[]', space=smem, size = 0x4, offset = 0x4, fixed_abs, tag = 'smem constant byte address 0x4 - core index']
  #allocation1 [shape = 'u32[144,128]{1,0:T(1,128)}', space=vmem, size = 0x12000, scoped, tag = 'internal scratch']
  %s0 = inlined_call_operand.vmem [shape: f32[8,1024], index: 0, kind: input, shape index: {}]
  %s1 = inlined_call_operand.hbm [shape: bf16[1024,256], index: 1, kind: input, shape index: {}]
  %s2 = inlined_call_operand.vmem [shape: f32[1,256], index: 2, kind: input, shape index: {}]
  %s3 = inlined_call_operand.vmem [shape: bf16[256,128], index: 3, kind: input, shape index: {}]
  %s4 = inlined_call_operand.vmem [shape: f32[1,128], index: 4, kind: input, shape index: {}]
  %s5 = inlined_call_operand.vmem [shape: bf16[128,128], index: 5, kind: input, shape index: {}]
  %s6 = inlined_call_operand.vmem [shape: f32[1,128], index: 6, kind: input, shape index: {}]
  %s7 = inlined_call_operand.hbm [shape: bf16[128,128], index: 7, kind: input, shape index: {}]
  %s8 = inlined_call_operand.vmem [shape: f32[1,128], index: 8, kind: input, shape index: {}]
  %s9 = inlined_call_operand.vmem [shape: f32[8,128], index: 9, kind: output, shape index: {}]
  %s10 = sld [smem:[#allocation0]]
  $region54: #{_forward.1} parent=0
    _
  %s12 = ssub.s32 1, %s10
  %s13 = scalar_select 0, %s12, %s10
  $region1: #{_forward.1} parent=0
    #allocation2 [shape = 'u8[524288]{0}', space=vmem, size = 0x80000, scoped, tag = 'input window, operand 1, single buffered']
    #allocation3 [shape = 's32[1]{0}', space=sflag, size = 0x4, scoped, tag = 'scoped memory for _forward.1']
    #allocation4 [shape = 'u8[32768]{0}', space=vmem, size = 0x8000, scoped, tag = 'input window, operand 7, single buffered']
    #allocation5 [shape = 's32[1]{0}', space=sflag, size = 0x4, scoped, tag = 'scoped memory for _forward.1']
    %14 = vsyncpa [#allocation3], 0
    %15 = vsyncpa [#allocation5], 0
    // Predicated region
    $region2: #{_forward.1} parent=1 // pred_check
      _
    $region3: #{_forward.1} parent=1 // pred_check_branch
      %17 = sbr.rel (0) target = $region5
    $region4: #{_forward.1} parent=1 // pred_region
      _
    $region5: #{_forward.1} parent=1 // pred_fallthru
      _
    // Predicated region
    $region6: #{_forward.1} parent=1 // pred_check
      _
    $region7: #{_forward.1} parent=1 // pred_check_branch
      %19 = sbr.rel (0) target = $region9
    $region8: #{_forward.1} parent=1 // pred_region
      %s21 = ssub.s32 16384, 16384
      %22 = vsyncadd [#allocation3], %s21
      %s23 = sshll.u32 [#allocation2], 4
      %s24 = int_to_ptr.vmem [resolvable:$true] %s23
      %29 = dma.hbm_to_vmem [thread:$0]  %s1, 16384, %s24, [#allocation3], 128, 128, 8
    $region9: #{_forward.1} parent=1 // pred_fallthru
      _
    // Predicated region
    $region10: #{_forward.1} parent=1 // pred_check
      _
    $region11: #{_forward.1} parent=1 // pred_check_branch
      %31 = sbr.rel (0) target = $region13
    $region12: #{_forward.1} parent=1 // pred_region
      _
    $region13: #{_forward.1} parent=1 // pred_fallthru
      _
    // Predicated region
    $region14: #{_forward.1} parent=1 // pred_check
      _
    $region15: #{_forward.1} parent=1 // pred_check_branch
      %33 = sbr.rel (0) target = $region17
    $region16: #{_forward.1} parent=1 // pred_region
      _
    $region17: #{_forward.1} parent=1 // pred_fallthru
      _
    // Predicated region
    $region18: #{_forward.1} parent=1 // pred_check
      _
    $region19: #{_forward.1} parent=1 // pred_check_branch
      %35 = sbr.rel (0) target = $region21
    $region20: #{_forward.1} parent=1 // pred_region
      _
    $region21: #{_forward.1} parent=1 // pred_fallthru
      _
    // Predicated region
    $region22: #{_forward.1} parent=1 // pred_check
      _
    $region23: #{_forward.1} parent=1 // pred_check_branch
      %37 = sbr.rel (0) target = $region25
    $region24: #{_forward.1} parent=1 // pred_region
      _
    $region25: #{_forward.1} parent=1 // pred_fallthru
      _
    // Predicated region
    $region26: #{_forward.1} parent=1 // pred_check
      _
    $region27: #{_forward.1} parent=1 // pred_check_branch
      %39 = sbr.rel (0) target = $region29
    $region28: #{_forward.1} parent=1 // pred_region
      _
    $region29: #{_forward.1} parent=1 // pred_fallthru
      _
    // Predicated region
    $region30: #{_forward.1} parent=1 // pred_check
      _
    $region31: #{_forward.1} parent=1 // pred_check_branch
      %41 = sbr.rel (0) target = $region33
    $region32: #{_forward.1} parent=1 // pred_region
      %s43 = ssub.s32 1024, 1024
      %44 = vsyncadd [#allocation5], %s43
      %s45 = sshll.u32 [#allocation4], 4
      %s46 = int_to_ptr.vmem [resolvable:$true] %s45
      %51 = dma.hbm_to_vmem [thread:$0]  %s7, 1024, %s46, [#allocation5], 64, 64, 4
    $region33: #{_forward.1} parent=1 // pred_fallthru
      _
    // Predicated region
    $region34: #{_forward.1} parent=1 // pred_check
      _
    $region35: #{_forward.1} parent=1 // pred_check_branch
      %53 = sbr.rel (0) target = $region37
    $region36: #{_forward.1} parent=1 // pred_region
      _
    $region37: #{_forward.1} parent=1 // pred_fallthru
      _
    // Predicated region
    $region38: #{_forward.1} parent=1 // pred_check
      _
    $region39: #{_forward.1} parent=1 // pred_check_branch
      %55 = sbr.rel (0) target = $region41
    $region40: #{_forward.1} parent=1 // pred_region
      %56 = dma.done [#allocation3], 16384
    $region41: #{_forward.1} parent=1 // pred_fallthru
      _
    // Predicated region
    $region42: #{_forward.1} parent=1 // pred_check
      _
    $region43: #{_forward.1} parent=1 // pred_check_branch
      %58 = sbr.rel (0) target = $region45
    $region44: #{_forward.1} parent=1 // pred_region
      %59 = dma.done [#allocation5], 1024
    $region45: #{_forward.1} parent=1 // pred_fallthru
      _
    %v61 = vld [vmem:[%s0] sm:$0xff]
    %v62 = vld [vmem:[%s0 + $0x8] sm:$0xff]
    %v63 = vld [vmem:[%s0 + $0x10] sm:$0xff]
    %v64 = vld [vmem:[%s0 + $0x18] sm:$0xff]
    %v65 = vld [vmem:[%s0 + $0x20] sm:$0xff]
    %v66 = vld [vmem:[%s0 + $0x28] sm:$0xff]
    %v67 = vld [vmem:[%s0 + $0x30] sm:$0xff]
    %v68 = vld [vmem:[%s0 + $0x38] sm:$0xff]
    %v69 = vpack.c.bf16 %v61, %v61
    %v70 = vpack.c.bf16 %v62, %v62
    %v71 = vpack.c.bf16 %v63, %v63
    %v72 = vpack.c.bf16 %v64, %v64
    %v73 = vpack.c.bf16 %v65, %v65
    %v74 = vpack.c.bf16 %v66, %v66
    %v75 = vpack.c.bf16 %v67, %v67
    %v76 = vpack.c.bf16 %v68, %v68
    %v77 = vld [vmem:[#allocation2] sm:$0xff]
    %v78 = vld [vmem:[#allocation2 + $0x8] sm:$0xff]
    %v79 = vld [vmem:[#allocation2 + $0x10] sm:$0xff]
    %v80 = vld [vmem:[#allocation2 + $0x18] sm:$0xff]
    %v81 = vld [vmem:[#allocation2 + $0x20] sm:$0xff]
    %v82 = vld [vmem:[#allocation2 + $0x28] sm:$0xff]
    %v83 = vld [vmem:[#allocation2 + $0x30] sm:$0xff]
    %v84 = vld [vmem:[#allocation2 + $0x38] sm:$0xff]
    %v85 = vld [vmem:[#allocation2 + $0x40] sm:$0xff]
    %v86 = vld [vmem:[#allocation2 + $0x48] sm:$0xff]
    %v87 = vld [vmem:[#allocation2 + $0x50] sm:$0xff]
    %v88 = vld [vmem:[#allocation2 + $0x58] sm:$0xff]
    %v89 = vld [vmem:[#allocation2 + $0x60] sm:$0xff]
    %v90 = vld [vmem:[#allocation2 + $0x68] sm:$0xff]
    %v91 = vld [vmem:[#allocation2 + $0x70] sm:$0xff]
    %v92 = vld [vmem:[#allocation2 + $0x78] sm:$0xff]
    %v93 = vld [vmem:[#allocation2 + $0x80] sm:$0xff]
    %v94 = vld [vmem:[#allocation2 + $0x88] sm:$0xff]
    %v95 = vld [vmem:[#allocation2 + $0x90] sm:$0xff]
    %v96 = vld [vmem:[#allocation2 + $0x98] sm:$0xff]
    %v97 = vld [vmem:[#allocation2 + $0xa0] sm:$0xff]
    %v98 = vld [vmem:[#allocation2 + $0xa8] sm:$0xff]
    %v99 = vld [vmem:[#allocation2 + $0xb0] sm:$0xff]
    %v100 = vld [vmem:[#allocation2 + $0xb8] sm:$0xff]
    %v101 = vld [vmem:[#allocation2 + $0xc0] sm:$0xff]
    %v102 = vld [vmem:[#allocation2 + $0xc8] sm:$0xff]
    %v103 = vld [vmem:[#allocation2 + $0xd0] sm:$0xff]
    %v104 = vld [vmem:[#allocation2 + $0xd8] sm:$0xff]
    %v105 = vld [vmem:[#allocation2 + $0xe0] sm:$0xff]
    %v106 = vld [vmem:[#allocation2 + $0xe8] sm:$0xff]
    %v107 = vld [vmem:[#allocation2 + $0xf0] sm:$0xff]
    %v108 = vld [vmem:[#allocation2 + $0xf8] sm:$0xff]
    %v109 = vld [vmem:[#allocation2 + $0x100] sm:$0xff]
    %v110 = vld [vmem:[#allocation2 + $0x108] sm:$0xff]
    %v111 = vld [vmem:[#allocation2 + $0x110] sm:$0xff]
    %v112 = vld [vmem:[#allocation2 + $0x118] sm:$0xff]
    %v113 = vld [vmem:[#allocation2 + $0x120] sm:$0xff]
    %v114 = vld [vmem:[#allocation2 + $0x128] sm:$0xff]
    %v115 = vld [vmem:[#allocation2 + $0x130] sm:$0xff]
    %v116 = vld [vmem:[#allocation2 + $0x138] sm:$0xff]
    %v117 = vld [vmem:[#allocation2 + $0x140] sm:$0xff]
    %v118 = vld [vmem:[#allocation2 + $0x148] sm:$0xff]
    %v119 = vld [vmem:[#allocation2 + $0x150] sm:$0xff]
    %v120 = vld [vmem:[#allocation2 + $0x158] sm:$0xff]
    %v121 = vld [vmem:[#allocation2 + $0x160] sm:$0xff]
    %v122 = vld [vmem:[#allocation2 + $0x168] sm:$0xff]
    %v123 = vld [vmem:[#allocation2 + $0x170] sm:$0xff]
    %v124 = vld [vmem:[#allocation2 + $0x178] sm:$0xff]
    %v125 = vld [vmem:[#allocation2 + $0x180] sm:$0xff]
    %v126 = vld [vmem:[#allocation2 + $0x188] sm:$0xff]
    %v127 = vld [vmem:[#allocation2 + $0x190] sm:$0xff]
    %v128 = vld [vmem:[#allocation2 + $0x198] sm:$0xff]
    %v129 = vld [vmem:[#allocation2 + $0x1a0] sm:$0xff]
    %v130 = vld [vmem:[#allocation2 + $0x1a8] sm:$0xff]
    %v131 = vld [vmem:[#allocation2 + $0x1b0] sm:$0xff]
    %v132 = vld [vmem:[#allocation2 + $0x1b8] sm:$0xff]
    %v133 = vld [vmem:[#allocation2 + $0x1c0] sm:$0xff]
    %v134 = vld [vmem:[#allocation2 + $0x1c8] sm:$0xff]
    %v135 = vld [vmem:[#allocation2 + $0x1d0] sm:$0xff]
    %v136 = vld [vmem:[#allocation2 + $0x1d8] sm:$0xff]
    %v137 = vld [vmem:[#allocation2 + $0x1e0] sm:$0xff]
    %v138 = vld [vmem:[#allocation2 + $0x1e8] sm:$0xff]
    %v139 = vld [vmem:[#allocation2 + $0x1f0] sm:$0xff]
    %v140 = vld [vmem:[#allocation2 + $0x1f8] sm:$0xff]
    %v141 = vld [vmem:[#allocation2 + $0x200] sm:$0xff]
    %v142 = vld [vmem:[#allocation2 + $0x208] sm:$0xff]
    %v143 = vld [vmem:[#allocation2 + $0x210] sm:$0xff]
    %v144 = vld [vmem:[#allocation2 + $0x218] sm:$0xff]
    %v145 = vld [vmem:[#allocation2 + $0x220] sm:$0xff]
    %v146 = vld [vmem:[#allocation2 + $0x228] sm:$0xff]
    %v147 = vld [vmem:[#allocation2 + $0x230] sm:$0xff]
    %v148 = vld [vmem:[#allocation2 + $0x238] sm:$0xff]
    %v149 = vld [vmem:[#allocation2 + $0x240] sm:$0xff]
    %v150 = vld [vmem:[#allocation2 + $0x248] sm:$0xff]
    %v151 = vld [vmem:[#allocation2 + $0x250] sm:$0xff]
    %v152 = vld [vmem:[#allocation2 + $0x258] sm:$0xff]
    %v153 = vld [vmem:[#allocation2 + $0x260] sm:$0xff]
    %v154 = vld [vmem:[#allocation2 + $0x268] sm:$0xff]
    %v155 = vld [vmem:[#allocation2 + $0x270] sm:$0xff]
    %v156 = vld [vmem:[#allocation2 + $0x278] sm:$0xff]
    %v157 = vld [vmem:[#allocation2 + $0x280] sm:$0xff]
    %v158 = vld [vmem:[#allocation2 + $0x288] sm:$0xff]
    %v159 = vld [vmem:[#allocation2 + $0x290] sm:$0xff]
    %v160 = vld [vmem:[#allocation2 + $0x298] sm:$0xff]
    %v161 = vld [vmem:[#allocation2 + $0x2a0] sm:$0xff]
    %v162 = vld [vmem:[#allocation2 + $0x2a8] sm:$0xff]
    %v163 = vld [vmem:[#allocation2 + $0x2b0] sm:$0xff]
    %v164 = vld [vmem:[#allocation2 + $0x2b8] sm:$0xff]
    %v165 = vld [vmem:[#allocation2 + $0x2c0] sm:$0xff]
    %v166 = vld [vmem:[#allocation2 + $0x2c8] sm:$0xff]
    %v167 = vld [vmem:[#allocation2 + $0x2d0] sm:$0xff]
    %v168 = vld [vmem:[#allocation2 + $0x2d8] sm:$0xff]
    %v169 = vld [vmem:[#allocation2 + $0x2e0] sm:$0xff]
    %v170 = vld [vmem:[#allocation2 + $0x2e8] sm:$0xff]
    %v171 = vld [vmem:[#allocation2 + $0x2f0] sm:$0xff]
    %v172 = vld [vmem:[#allocation2 + $0x2f8] sm:$0xff]
    %v173 = vld [vmem:[#allocation2 + $0x300] sm:$0xff]
    %v174 = vld [vmem:[#allocation2 + $0x308] sm:$0xff]
    %v175 = vld [vmem:[#allocation2 + $0x310] sm:$0xff]
    %v176 = vld [vmem:[#allocation2 + $0x318] sm:$0xff]
    %v177 = vld [vmem:[#allocation2 + $0x320] sm:$0xff]
    %v178 = vld [vmem:[#allocation2 + $0x328] sm:$0xff]
    %v179 = vld [vmem:[#allocation2 + $0x330] sm:$0xff]
    %v180 = vld [vmem:[#allocation2 + $0x338] sm:$0xff]
    %v181 = vld [vmem:[#allocation2 + $0x340] sm:$0xff]
    %v182 = vld [vmem:[#allocation2 + $0x348] sm:$0xff]
    %v183 = vld [vmem:[#allocation2 + $0x350] sm:$0xff]
    %v184 = vld [vmem:[#allocation2 + $0x358] sm:$0xff]
    %v185 = vld [vmem:[#allocation2 + $0x360] sm:$0xff]
    %v186 = vld [vmem:[#allocation2 + $0x368] sm:$0xff]
    %v187 = vld [vmem:[#allocation2 + $0x370] sm:$0xff]
    %v188 = vld [vmem:[#allocation2 + $0x378] sm:$0xff]
    %v189 = vld [vmem:[#allocation2 + $0x380] sm:$0xff]
    %v190 = vld [vmem:[#allocation2 + $0x388] sm:$0xff]
    %v191 = vld [vmem:[#allocation2 + $0x390] sm:$0xff]
    %v192 = vld [vmem:[#allocation2 + $0x398] sm:$0xff]
    %v193 = vld [vmem:[#allocation2 + $0x3a0] sm:$0xff]
    %v194 = vld [vmem:[#allocation2 + $0x3a8] sm:$0xff]
    %v195 = vld [vmem:[#allocation2 + $0x3b0] sm:$0xff]
    %v196 = vld [vmem:[#allocation2 + $0x3b8] sm:$0xff]
    %v197 = vld [vmem:[#allocation2 + $0x3c0] sm:$0xff]
    %v198 = vld [vmem:[#allocation2 + $0x3c8] sm:$0xff]
    %v199 = vld [vmem:[#allocation2 + $0x3d0] sm:$0xff]
    %v200 = vld [vmem:[#allocation2 + $0x3d8] sm:$0xff]
    %v201 = vld [vmem:[#allocation2 + $0x3e0] sm:$0xff]
    %v202 = vld [vmem:[#allocation2 + $0x3e8] sm:$0xff]
    %v203 = vld [vmem:[#allocation2 + $0x3f0] sm:$0xff]
    %v204 = vld [vmem:[#allocation2 + $0x3f8] sm:$0xff]
    %v205 = vld [vmem:[%s2] sm:$0x3]
    %v207 = vlaneseq
    %v208 = vshrl.u32 %v207, 7
    %v209 = vsub.s32 0, %v208
    %v210 = vrot.slane %v205, %v209
    %v211 = vlaneseq
    %v212 = vshrl.u32 %v211, 7
    %v213 = vsub.s32 1, %v212
    %v214 = vrot.slane %v205, %v213
    %v345 = vunpack.c.l.b16 %v77
    %v346 = vunpack.c.h.b16 %v77
    %v347 = vunpack.c.l.b16 %v78
    %v348 = vunpack.c.h.b16 %v78
    %v349 = vunpack.c.l.b16 %v79
    %v350 = vunpack.c.h.b16 %v79
    %v351 = vunpack.c.l.b16 %v80
    %v352 = vunpack.c.h.b16 %v80
    %v353 = vunpack.c.l.b16 %v81
    %v354 = vunpack.c.h.b16 %v81
    %v355 = vunpack.c.l.b16 %v82
    %v356 = vunpack.c.h.b16 %v82
    %v357 = vunpack.c.l.b16 %v83
    %v358 = vunpack.c.h.b16 %v83
    %v359 = vunpack.c.l.b16 %v84
    %v360 = vunpack.c.h.b16 %v84
    %v361 = vunpack.c.l.b16 %v85
    %v362 = vunpack.c.h.b16 %v85
    %v363 = vunpack.c.l.b16 %v86
    %v364 = vunpack.c.h.b16 %v86
    %v365 = vunpack.c.l.b16 %v87
    %v366 = vunpack.c.h.b16 %v87
    %v367 = vunpack.c.l.b16 %v88
    %v368 = vunpack.c.h.b16 %v88
    %v369 = vunpack.c.l.b16 %v89
    %v370 = vunpack.c.h.b16 %v89
    %v371 = vunpack.c.l.b16 %v90
    %v372 = vunpack.c.h.b16 %v90
    %v373 = vunpack.c.l.b16 %v91
    %v374 = vunpack.c.h.b16 %v91
    %v375 = vunpack.c.l.b16 %v92
    %v376 = vunpack.c.h.b16 %v92
    %v377 = vunpack.c.l.b16 %v93
    %v378 = vunpack.c.h.b16 %v93
    %v379 = vunpack.c.l.b16 %v94
    %v380 = vunpack.c.h.b16 %v94
    %v381 = vunpack.c.l.b16 %v95
    %v382 = vunpack.c.h.b16 %v95
    %v383 = vunpack.c.l.b16 %v96
    %v384 = vunpack.c.h.b16 %v96
    %v385 = vunpack.c.l.b16 %v97
    %v386 = vunpack.c.h.b16 %v97
    %v387 = vunpack.c.l.b16 %v98
    %v388 = vunpack.c.h.b16 %v98
    %v389 = vunpack.c.l.b16 %v99
    %v390 = vunpack.c.h.b16 %v99
    %v391 = vunpack.c.l.b16 %v100
    %v392 = vunpack.c.h.b16 %v100
    %v393 = vunpack.c.l.b16 %v101
    %v394 = vunpack.c.h.b16 %v101
    %v395 = vunpack.c.l.b16 %v102
    %v396 = vunpack.c.h.b16 %v102
    %v397 = vunpack.c.l.b16 %v103
    %v398 = vunpack.c.h.b16 %v103
    %v399 = vunpack.c.l.b16 %v104
    %v400 = vunpack.c.h.b16 %v104
    %v401 = vunpack.c.l.b16 %v105
    %v402 = vunpack.c.h.b16 %v105
    %v403 = vunpack.c.l.b16 %v106
    %v404 = vunpack.c.h.b16 %v106
    %v405 = vunpack.c.l.b16 %v107
    %v406 = vunpack.c.h.b16 %v107
    %v407 = vunpack.c.l.b16 %v108
    %v408 = vunpack.c.h.b16 %v108
    %v409 = vunpack.c.l.b16 %v109
    %v410 = vunpack.c.h.b16 %v109
    %v411 = vunpack.c.l.b16 %v110
    %v412 = vunpack.c.h.b16 %v110
    %v413 = vunpack.c.l.b16 %v111
    %v414 = vunpack.c.h.b16 %v111
    %v415 = vunpack.c.l.b16 %v112
    %v416 = vunpack.c.h.b16 %v112
    %v417 = vunpack.c.l.b16 %v113
    %v418 = vunpack.c.h.b16 %v113
    %v419 = vunpack.c.l.b16 %v114
    %v420 = vunpack.c.h.b16 %v114
    %v421 = vunpack.c.l.b16 %v115
    %v422 = vunpack.c.h.b16 %v115
    %v423 = vunpack.c.l.b16 %v116
    %v424 = vunpack.c.h.b16 %v116
    %v425 = vunpack.c.l.b16 %v117
    %v426 = vunpack.c.h.b16 %v117
    %v427 = vunpack.c.l.b16 %v118
    %v428 = vunpack.c.h.b16 %v118
    %v429 = vunpack.c.l.b16 %v119
    %v430 = vunpack.c.h.b16 %v119
    %v431 = vunpack.c.l.b16 %v120
    %v432 = vunpack.c.h.b16 %v120
    %v433 = vunpack.c.l.b16 %v121
    %v434 = vunpack.c.h.b16 %v121
    %v435 = vunpack.c.l.b16 %v122
    %v436 = vunpack.c.h.b16 %v122
    %v437 = vunpack.c.l.b16 %v123
    %v438 = vunpack.c.h.b16 %v123
    %v439 = vunpack.c.l.b16 %v124
    %v440 = vunpack.c.h.b16 %v124
    %v441 = vunpack.c.l.b16 %v125
    %v442 = vunpack.c.h.b16 %v125
    %v443 = vunpack.c.l.b16 %v126
    %v444 = vunpack.c.h.b16 %v126
    %v445 = vunpack.c.l.b16 %v127
    %v446 = vunpack.c.h.b16 %v127
    %v447 = vunpack.c.l.b16 %v128
    %v448 = vunpack.c.h.b16 %v128
    %v449 = vunpack.c.l.b16 %v129
    %v450 = vunpack.c.h.b16 %v129
    %v451 = vunpack.c.l.b16 %v130
    %v452 = vunpack.c.h.b16 %v130
    %v453 = vunpack.c.l.b16 %v131
    %v454 = vunpack.c.h.b16 %v131
    %v455 = vunpack.c.l.b16 %v132
    %v456 = vunpack.c.h.b16 %v132
    %v457 = vunpack.c.l.b16 %v133
    %v458 = vunpack.c.h.b16 %v133
    %v459 = vunpack.c.l.b16 %v134
    %v460 = vunpack.c.h.b16 %v134
    %v461 = vunpack.c.l.b16 %v135
    %v462 = vunpack.c.h.b16 %v135
    %v463 = vunpack.c.l.b16 %v136
    %v464 = vunpack.c.h.b16 %v136
    %v465 = vunpack.c.l.b16 %v137
    %v466 = vunpack.c.h.b16 %v137
    %v467 = vunpack.c.l.b16 %v138
    %v468 = vunpack.c.h.b16 %v138
    %v469 = vunpack.c.l.b16 %v139
    %v470 = vunpack.c.h.b16 %v139
    %v471 = vunpack.c.l.b16 %v140
    %v472 = vunpack.c.h.b16 %v140
    %v473 = vunpack.c.l.b16 %v141
    %v474 = vunpack.c.h.b16 %v141
    %v475 = vunpack.c.l.b16 %v142
    %v476 = vunpack.c.h.b16 %v142
    %v477 = vunpack.c.l.b16 %v143
    %v478 = vunpack.c.h.b16 %v143
    %v479 = vunpack.c.l.b16 %v144
    %v480 = vunpack.c.h.b16 %v144
    %v481 = vunpack.c.l.b16 %v145
    %v482 = vunpack.c.h.b16 %v145
    %v483 = vunpack.c.l.b16 %v146
    %v484 = vunpack.c.h.b16 %v146
    %v485 = vunpack.c.l.b16 %v147
    %v486 = vunpack.c.h.b16 %v147
    %v487 = vunpack.c.l.b16 %v148
    %v488 = vunpack.c.h.b16 %v148
    %v489 = vunpack.c.l.b16 %v149
    %v490 = vunpack.c.h.b16 %v149
    %v491 = vunpack.c.l.b16 %v150
    %v492 = vunpack.c.h.b16 %v150
    %v493 = vunpack.c.l.b16 %v151
    %v494 = vunpack.c.h.b16 %v151
    %v495 = vunpack.c.l.b16 %v152
    %v496 = vunpack.c.h.b16 %v152
    %v497 = vunpack.c.l.b16 %v153
    %v498 = vunpack.c.h.b16 %v153
    %v499 = vunpack.c.l.b16 %v154
    %v500 = vunpack.c.h.b16 %v154
    %v501 = vunpack.c.l.b16 %v155
    %v502 = vunpack.c.h.b16 %v155
    %v503 = vunpack.c.l.b16 %v156
    %v504 = vunpack.c.h.b16 %v156
    %v505 = vunpack.c.l.b16 %v157
    %v506 = vunpack.c.h.b16 %v157
    %v507 = vunpack.c.l.b16 %v158
    %v508 = vunpack.c.h.b16 %v158
    %v509 = vunpack.c.l.b16 %v159
    %v510 = vunpack.c.h.b16 %v159
    %v511 = vunpack.c.l.b16 %v160
    %v512 = vunpack.c.h.b16 %v160
    %v513 = vunpack.c.l.b16 %v161
    %v514 = vunpack.c.h.b16 %v161
    %v515 = vunpack.c.l.b16 %v162
    %v516 = vunpack.c.h.b16 %v162
    %v517 = vunpack.c.l.b16 %v163
    %v518 = vunpack.c.h.b16 %v163
    %v519 = vunpack.c.l.b16 %v164
    %v520 = vunpack.c.h.b16 %v164
    %v521 = vunpack.c.l.b16 %v165
    %v522 = vunpack.c.h.b16 %v165
    %v523 = vunpack.c.l.b16 %v166
    %v524 = vunpack.c.h.b16 %v166
    %v525 = vunpack.c.l.b16 %v167
    %v526 = vunpack.c.h.b16 %v167
    %v527 = vunpack.c.l.b16 %v168
    %v528 = vunpack.c.h.b16 %v168
    %v529 = vunpack.c.l.b16 %v169
    %v530 = vunpack.c.h.b16 %v169
    %v531 = vunpack.c.l.b16 %v170
    %v532 = vunpack.c.h.b16 %v170
    %v533 = vunpack.c.l.b16 %v171
    %v534 = vunpack.c.h.b16 %v171
    %v535 = vunpack.c.l.b16 %v172
    %v536 = vunpack.c.h.b16 %v172
    %v537 = vunpack.c.l.b16 %v173
    %v538 = vunpack.c.h.b16 %v173
    %v539 = vunpack.c.l.b16 %v174
    %v540 = vunpack.c.h.b16 %v174
    %v541 = vunpack.c.l.b16 %v175
    %v542 = vunpack.c.h.b16 %v175
    %v543 = vunpack.c.l.b16 %v176
    %v544 = vunpack.c.h.b16 %v176
    %v545 = vunpack.c.l.b16 %v177
    %v546 = vunpack.c.h.b16 %v177
    %v547 = vunpack.c.l.b16 %v178
    %v548 = vunpack.c.h.b16 %v178
    %v549 = vunpack.c.l.b16 %v179
    %v550 = vunpack.c.h.b16 %v179
    %v551 = vunpack.c.l.b16 %v180
    %v552 = vunpack.c.h.b16 %v180
    %v553 = vunpack.c.l.b16 %v181
    %v554 = vunpack.c.h.b16 %v181
    %v555 = vunpack.c.l.b16 %v182
    %v556 = vunpack.c.h.b16 %v182
    %v557 = vunpack.c.l.b16 %v183
    %v558 = vunpack.c.h.b16 %v183
    %v559 = vunpack.c.l.b16 %v184
    %v560 = vunpack.c.h.b16 %v184
    %v561 = vunpack.c.l.b16 %v185
    %v562 = vunpack.c.h.b16 %v185
    %v563 = vunpack.c.l.b16 %v186
    %v564 = vunpack.c.h.b16 %v186
    %v565 = vunpack.c.l.b16 %v187
    %v566 = vunpack.c.h.b16 %v187
    %v567 = vunpack.c.l.b16 %v188
    %v568 = vunpack.c.h.b16 %v188
    %v569 = vunpack.c.l.b16 %v189
    %v570 = vunpack.c.h.b16 %v189
    %v571 = vunpack.c.l.b16 %v190
    %v572 = vunpack.c.h.b16 %v190
    %v573 = vunpack.c.l.b16 %v191
    %v574 = vunpack.c.h.b16 %v191
    %v575 = vunpack.c.l.b16 %v192
    %v576 = vunpack.c.h.b16 %v192
    %v577 = vunpack.c.l.b16 %v193
    %v578 = vunpack.c.h.b16 %v193
    %v579 = vunpack.c.l.b16 %v194
    %v580 = vunpack.c.h.b16 %v194
    %v581 = vunpack.c.l.b16 %v195
    %v582 = vunpack.c.h.b16 %v195
    %v583 = vunpack.c.l.b16 %v196
    %v584 = vunpack.c.h.b16 %v196
    %v585 = vunpack.c.l.b16 %v197
    %v586 = vunpack.c.h.b16 %v197
    %v587 = vunpack.c.l.b16 %v198
    %v588 = vunpack.c.h.b16 %v198
    %v589 = vunpack.c.l.b16 %v199
    %v590 = vunpack.c.h.b16 %v199
    %v591 = vunpack.c.l.b16 %v200
    %v592 = vunpack.c.h.b16 %v200
    %v593 = vunpack.c.l.b16 %v201
    %v594 = vunpack.c.h.b16 %v201
    %v595 = vunpack.c.l.b16 %v202
    %v596 = vunpack.c.h.b16 %v202
    %v597 = vunpack.c.l.b16 %v203
    %v598 = vunpack.c.h.b16 %v203
    %v599 = vunpack.c.l.b16 %v204
    %v600 = vunpack.c.h.b16 %v204
    %v601 = vpack.c.b16 %v347, %v345
    %v602 = vpack.c.b16 %v348, %v346
    %v603 = vpack.c.b16 %v351, %v349
    %v604 = vpack.c.b16 %v352, %v350
    %v605 = vpack.c.b16 %v355, %v353
    %v606 = vpack.c.b16 %v356, %v354
    %v607 = vpack.c.b16 %v359, %v357
    %v608 = vpack.c.b16 %v360, %v358
    %v609 = vpack.c.b16 %v363, %v361
    %v610 = vpack.c.b16 %v364, %v362
    %v611 = vpack.c.b16 %v367, %v365
    %v612 = vpack.c.b16 %v368, %v366
    %v613 = vpack.c.b16 %v371, %v369
    %v614 = vpack.c.b16 %v372, %v370
    %v615 = vpack.c.b16 %v375, %v373
    %v616 = vpack.c.b16 %v376, %v374
    %v617 = vpack.c.b16 %v379, %v377
    %v618 = vpack.c.b16 %v380, %v378
    %v619 = vpack.c.b16 %v383, %v381
    %v620 = vpack.c.b16 %v384, %v382
    %v621 = vpack.c.b16 %v387, %v385
    %v622 = vpack.c.b16 %v388, %v386
    %v623 = vpack.c.b16 %v391, %v389
    %v624 = vpack.c.b16 %v392, %v390
    %v625 = vpack.c.b16 %v395, %v393
    %v626 = vpack.c.b16 %v396, %v394
    %v627 = vpack.c.b16 %v399, %v397
    %v628 = vpack.c.b16 %v400, %v398
    %v629 = vpack.c.b16 %v403, %v401
    %v630 = vpack.c.b16 %v404, %v402
    %v631 = vpack.c.b16 %v407, %v405
    %v632 = vpack.c.b16 %v408, %v406
    %v633 = vpack.c.b16 %v411, %v409
    %v634 = vpack.c.b16 %v412, %v410
    %v635 = vpack.c.b16 %v415, %v413
    %v636 = vpack.c.b16 %v416, %v414
    %v637 = vpack.c.b16 %v419, %v417
    %v638 = vpack.c.b16 %v420, %v418
    %v639 = vpack.c.b16 %v423, %v421
    %v640 = vpack.c.b16 %v424, %v422
    %v641 = vpack.c.b16 %v427, %v425
    %v642 = vpack.c.b16 %v428, %v426
    %v643 = vpack.c.b16 %v431, %v429
    %v644 = vpack.c.b16 %v432, %v430
    %v645 = vpack.c.b16 %v435, %v433
    %v646 = vpack.c.b16 %v436, %v434
    %v647 = vpack.c.b16 %v439, %v437
    %v648 = vpack.c.b16 %v440, %v438
    %v649 = vpack.c.b16 %v443, %v441
    %v650 = vpack.c.b16 %v444, %v442
    %v651 = vpack.c.b16 %v447, %v445
    %v652 = vpack.c.b16 %v448, %v446
    %v653 = vpack.c.b16 %v451, %v449
    %v654 = vpack.c.b16 %v452, %v450
    %v655 = vpack.c.b16 %v455, %v453
    %v656 = vpack.c.b16 %v456, %v454
    %v657 = vpack.c.b16 %v459, %v457
    %v658 = vpack.c.b16 %v460, %v458
    %v659 = vpack.c.b16 %v463, %v461
    %v660 = vpack.c.b16 %v464, %v462
    %v661 = vpack.c.b16 %v467, %v465
    %v662 = vpack.c.b16 %v468, %v466
    %v663 = vpack.c.b16 %v471, %v469
    %v664 = vpack.c.b16 %v472, %v470
    %v665 = vpack.c.b16 %v475, %v473
    %v666 = vpack.c.b16 %v476, %v474
    %v667 = vpack.c.b16 %v479, %v477
    %v668 = vpack.c.b16 %v480, %v478
    %v669 = vpack.c.b16 %v483, %v481
    %v670 = vpack.c.b16 %v484, %v482
    %v671 = vpack.c.b16 %v487, %v485
    %v672 = vpack.c.b16 %v488, %v486
    %v673 = vpack.c.b16 %v491, %v489
    %v674 = vpack.c.b16 %v492, %v490
    %v675 = vpack.c.b16 %v495, %v493
    %v676 = vpack.c.b16 %v496, %v494
    %v677 = vpack.c.b16 %v499, %v497
    %v678 = vpack.c.b16 %v500, %v498
    %v679 = vpack.c.b16 %v503, %v501
    %v680 = vpack.c.b16 %v504, %v502
    %v681 = vpack.c.b16 %v507, %v505
    %v682 = vpack.c.b16 %v508, %v506
    %v683 = vpack.c.b16 %v511, %v509
    %v684 = vpack.c.b16 %v512, %v510
    %v685 = vpack.c.b16 %v515, %v513
    %v686 = vpack.c.b16 %v516, %v514
    %v687 = vpack.c.b16 %v519, %v517
    %v688 = vpack.c.b16 %v520, %v518
    %v689 = vpack.c.b16 %v523, %v521
    %v690 = vpack.c.b16 %v524, %v522
    %v691 = vpack.c.b16 %v527, %v525
    %v692 = vpack.c.b16 %v528, %v526
    %v693 = vpack.c.b16 %v531, %v529
    %v694 = vpack.c.b16 %v532, %v530
    %v695 = vpack.c.b16 %v535, %v533
    %v696 = vpack.c.b16 %v536, %v534
    %v697 = vpack.c.b16 %v539, %v537
    %v698 = vpack.c.b16 %v540, %v538
    %v699 = vpack.c.b16 %v543, %v541
    %v700 = vpack.c.b16 %v544, %v542
    %v701 = vpack.c.b16 %v547, %v545
    %v702 = vpack.c.b16 %v548, %v546
    %v703 = vpack.c.b16 %v551, %v549
    %v704 = vpack.c.b16 %v552, %v550
    %v705 = vpack.c.b16 %v555, %v553
    %v706 = vpack.c.b16 %v556, %v554
    %v707 = vpack.c.b16 %v559, %v557
    %v708 = vpack.c.b16 %v560, %v558
    %v709 = vpack.c.b16 %v563, %v561
    %v710 = vpack.c.b16 %v564, %v562
    %v711 = vpack.c.b16 %v567, %v565
    %v712 = vpack.c.b16 %v568, %v566
    %v713 = vpack.c.b16 %v571, %v569
    %v714 = vpack.c.b16 %v572, %v570
    %v715 = vpack.c.b16 %v575, %v573
    %v716 = vpack.c.b16 %v576, %v574
    %v717 = vpack.c.b16 %v579, %v577
    %v718 = vpack.c.b16 %v580, %v578
    %v719 = vpack.c.b16 %v583, %v581
    %v720 = vpack.c.b16 %v584, %v582
    %v721 = vpack.c.b16 %v587, %v585
    %v722 = vpack.c.b16 %v588, %v586
    %v723 = vpack.c.b16 %v591, %v589
    %v724 = vpack.c.b16 %v592, %v590
    %v725 = vpack.c.b16 %v595, %v593
    %v726 = vpack.c.b16 %v596, %v594
    %v727 = vpack.c.b16 %v599, %v597
    %v728 = vpack.c.b16 %v600, %v598
    %857 = vmatprep.subr.bf16.mxu0 %v616
    %858 = vmatpush1.bf16.msra.mxu0 %v615
    %859 = vmatprep.subr.bf16.mxu0 %v614
    %860 = vmatpush1.bf16.msra.mxu0 %v613
    %861 = vmatprep.subr.bf16.mxu0 %v612
    %862 = vmatpush1.bf16.msra.mxu0 %v611
    %863 = vmatprep.subr.bf16.mxu0 %v610
    %864 = vmatpush1.bf16.msra.mxu0 %v609
    %865 = vmatprep.subr.bf16.mxu0 %v608
    %866 = vmatpush1.bf16.msra.mxu0 %v607
    %867 = vmatprep.subr.bf16.mxu0 %v606
    %868 = vmatpush1.bf16.msra.mxu0 %v605
    %869 = vmatprep.subr.bf16.mxu0 %v604
    %870 = vmatpush1.bf16.msra.mxu0 %v603
    %871 = vmatprep.subr.bf16.mxu0 %v602
    %872 = vmatpush1.bf16.msra.mxu0 %v601
    %873 = vmatprep.subr.bf16.mxu0 %v632
    %874 = vmatpush2.bf16.msra.mxu0 %v631
    %875 = vmatprep.subr.bf16.mxu0 %v630
    %876 = vmatpush2.bf16.msra.mxu0 %v629
    %877 = vmatprep.subr.bf16.mxu0 %v628
    %878 = vmatpush2.bf16.msra.mxu0 %v627
    %879 = vmatprep.subr.bf16.mxu0 %v626
    %880 = vmatpush2.bf16.msra.mxu0 %v625
    %881 = vmatprep.subr.bf16.mxu0 %v624
    %882 = vmatpush2.bf16.msra.mxu0 %v623
    %883 = vmatprep.subr.bf16.mxu0 %v622
    %884 = vmatpush2.bf16.msra.mxu0 %v621
    %885 = vmatprep.subr.bf16.mxu0 %v620
    %886 = vmatpush2.bf16.msra.mxu0 %v619
    %887 = vmatprep.subr.bf16.mxu0 %v618
    %888 = vmatpush2.bf16.msra.mxu0 %v617
    %889 = vmatprep.mubr.bf16.mxu0 %v70
    %890 = vmatmul.mubr.bf16.gmra.mxu0 %v69
    %v891 = vpop.f32.mrf.mxu0
    %v892 = vadd.f32 %v210, %v891
    %v893 = vpop.f32.mrf.mxu0
    %v894 = vadd.f32 %v214, %v893
    %v895 = vpop.f32.mrf.mxu0
    %v896 = vpop.f32.mrf.mxu0
    %897 = vdwg.mxu0
    %898 = vmatprep.subr.bf16.mxu0 %v648
    %899 = vmatpush1.bf16.msra.mxu0 %v647
    %900 = vmatprep.subr.bf16.mxu0 %v646
    %901 = vmatpush1.bf16.msra.mxu0 %v645
    %902 = vmatprep.subr.bf16.mxu0 %v644
    %903 = vmatpush1.bf16.msra.mxu0 %v643
    %904 = vmatprep.subr.bf16.mxu0 %v642
    %905 = vmatpush1.bf16.msra.mxu0 %v641
    %906 = vmatprep.subr.bf16.mxu0 %v640
    %907 = vmatpush1.bf16.msra.mxu0 %v639
    %908 = vmatprep.subr.bf16.mxu0 %v638
    %909 = vmatpush1.bf16.msra.mxu0 %v637
    %910 = vmatprep.subr.bf16.mxu0 %v636
    %911 = vmatpush1.bf16.msra.mxu0 %v635
    %912 = vmatprep.subr.bf16.mxu0 %v634
    %913 = vmatpush1.bf16.msra.mxu0 %v633
    %914 = vmatprep.subr.bf16.mxu0 %v664
    %915 = vmatpush2.bf16.msra.mxu0 %v663
    %916 = vmatprep.subr.bf16.mxu0 %v662
    %917 = vmatpush2.bf16.msra.mxu0 %v661
    %918 = vmatprep.subr.bf16.mxu0 %v660
    %919 = vmatpush2.bf16.msra.mxu0 %v659
    %920 = vmatprep.subr.bf16.mxu0 %v658
    %921 = vmatpush2.bf16.msra.mxu0 %v657
    %922 = vmatprep.subr.bf16.mxu0 %v656
    %923 = vmatpush2.bf16.msra.mxu0 %v655
    %924 = vmatprep.subr.bf16.mxu0 %v654
    %925 = vmatpush2.bf16.msra.mxu0 %v653
    %926 = vmatprep.subr.bf16.mxu0 %v652
    %927 = vmatpush2.bf16.msra.mxu0 %v651
    %928 = vmatprep.subr.bf16.mxu0 %v650
    %929 = vmatpush2.bf16.msra.mxu0 %v649
    %930 = vmatprep.mubr.bf16.mxu0 %v72
    %931 = vmatmul.mubr.bf16.gmra.mxu0 %v71
    %v932 = vpop.f32.mrf.mxu0
    %v933 = vadd.f32 %v892, %v932
    %v934 = vpop.f32.mrf.mxu0
    %v935 = vadd.f32 %v894, %v934
    %v936 = vpop.f32.mrf.mxu0
    %v937 = vpop.f32.mrf.mxu0
    %938 = vdwg.mxu0
    %939 = vmatprep.subr.bf16.mxu0 %v680
    %940 = vmatpush1.bf16.msra.mxu0 %v679
    %941 = vmatprep.subr.bf16.mxu0 %v678
    %942 = vmatpush1.bf16.msra.mxu0 %v677
    %943 = vmatprep.subr.bf16.mxu0 %v676
    %944 = vmatpush1.bf16.msra.mxu0 %v675
    %945 = vmatprep.subr.bf16.mxu0 %v674
    %946 = vmatpush1.bf16.msra.mxu0 %v673
    %947 = vmatprep.subr.bf16.mxu0 %v672
    %948 = vmatpush1.bf16.msra.mxu0 %v671
    %949 = vmatprep.subr.bf16.mxu0 %v670
    %950 = vmatpush1.bf16.msra.mxu0 %v669
    %951 = vmatprep.subr.bf16.mxu0 %v668
    %952 = vmatpush1.bf16.msra.mxu0 %v667
    %953 = vmatprep.subr.bf16.mxu0 %v666
    %954 = vmatpush1.bf16.msra.mxu0 %v665
    %955 = vmatprep.subr.bf16.mxu0 %v696
    %956 = vmatpush2.bf16.msra.mxu0 %v695
    %957 = vmatprep.subr.bf16.mxu0 %v694
    %958 = vmatpush2.bf16.msra.mxu0 %v693
    %959 = vmatprep.subr.bf16.mxu0 %v692
    %960 = vmatpush2.bf16.msra.mxu0 %v691
    %961 = vmatprep.subr.bf16.mxu0 %v690
    %962 = vmatpush2.bf16.msra.mxu0 %v689
    %963 = vmatprep.subr.bf16.mxu0 %v688
    %964 = vmatpush2.bf16.msra.mxu0 %v687
    %965 = vmatprep.subr.bf16.mxu0 %v686
    %966 = vmatpush2.bf16.msra.mxu0 %v685
    %967 = vmatprep.subr.bf16.mxu0 %v684
    %968 = vmatpush2.bf16.msra.mxu0 %v683
    %969 = vmatprep.subr.bf16.mxu0 %v682
    %970 = vmatpush2.bf16.msra.mxu0 %v681
    %971 = vmatprep.mubr.bf16.mxu0 %v74
    %972 = vmatmul.mubr.bf16.gmra.mxu0 %v73
    %v973 = vpop.f32.mrf.mxu0
    %v974 = vadd.f32 %v933, %v973
    %v975 = vpop.f32.mrf.mxu0
    %v976 = vadd.f32 %v935, %v975
    %v977 = vpop.f32.mrf.mxu0
    %v978 = vpop.f32.mrf.mxu0
    %979 = vdwg.mxu0
    %980 = vmatprep.subr.bf16.mxu0 %v712
    %981 = vmatpush1.bf16.msra.mxu0 %v711
    %982 = vmatprep.subr.bf16.mxu0 %v710
    %983 = vmatpush1.bf16.msra.mxu0 %v709
    %984 = vmatprep.subr.bf16.mxu0 %v708
    %985 = vmatpush1.bf16.msra.mxu0 %v707
    %986 = vmatprep.subr.bf16.mxu0 %v706
    %987 = vmatpush1.bf16.msra.mxu0 %v705
    %988 = vmatprep.subr.bf16.mxu0 %v704
    %989 = vmatpush1.bf16.msra.mxu0 %v703
    %990 = vmatprep.subr.bf16.mxu0 %v702
    %991 = vmatpush1.bf16.msra.mxu0 %v701
    %992 = vmatprep.subr.bf16.mxu0 %v700
    %993 = vmatpush1.bf16.msra.mxu0 %v699
    %994 = vmatprep.subr.bf16.mxu0 %v698
    %995 = vmatpush1.bf16.msra.mxu0 %v697
    %996 = vmatprep.subr.bf16.mxu0 %v728
    %997 = vmatpush2.bf16.msra.mxu0 %v727
    %998 = vmatprep.subr.bf16.mxu0 %v726
    %999 = vmatpush2.bf16.msra.mxu0 %v725
    %1000 = vmatprep.subr.bf16.mxu0 %v724
    %1001 = vmatpush2.bf16.msra.mxu0 %v723
    %1002 = vmatprep.subr.bf16.mxu0 %v722
    %1003 = vmatpush2.bf16.msra.mxu0 %v721
    %1004 = vmatprep.subr.bf16.mxu0 %v720
    %1005 = vmatpush2.bf16.msra.mxu0 %v719
    %1006 = vmatprep.subr.bf16.mxu0 %v718
    %1007 = vmatpush2.bf16.msra.mxu0 %v717
    %1008 = vmatprep.subr.bf16.mxu0 %v716
    %1009 = vmatpush2.bf16.msra.mxu0 %v715
    %1010 = vmatprep.subr.bf16.mxu0 %v714
    %1011 = vmatpush2.bf16.msra.mxu0 %v713
    %1012 = vmatprep.mubr.bf16.mxu0 %v76
    %1013 = vmatmul.mubr.bf16.gmra.mxu0 %v75
    %v1014 = vpop.f32.mrf.mxu0
    %v1015 = vadd.f32 %v974, %v1014
    %v1016 = vpop.f32.mrf.mxu0
    %v1017 = vadd.f32 %v976, %v1016
    %v1018 = vpop.f32.mrf.mxu0
    %v1019 = vpop.f32.mrf.mxu0
    %1020 = vdwg.mxu0
    %v1021 = vmax.f32 %v1015, 0.0
    %v1022 = vmax.f32 %v1017, 0.0
    %v1023 = vpack.c.bf16 %v1021, %v1021
    %v1024 = vpack.c.bf16 %v1022, %v1022
    %v1025 = vld [vmem:[%s3] sm:$0xf]
    %v1026 = vld [vmem:[%s3 + $0x4] sm:$0xf]
    %v1027 = vld [vmem:[%s3 + $0x8] sm:$0xf]
    %v1028 = vld [vmem:[%s3 + $0xc] sm:$0xf]
    %v1029 = vld [vmem:[%s3 + $0x10] sm:$0xf]
    %v1030 = vld [vmem:[%s3 + $0x14] sm:$0xf]
    %v1031 = vld [vmem:[%s3 + $0x18] sm:$0xf]
    %v1032 = vld [vmem:[%s3 + $0x1c] sm:$0xf]
    %v1033 = vld [vmem:[%s3 + $0x20] sm:$0xf]
    %v1034 = vld [vmem:[%s3 + $0x24] sm:$0xf]
    %v1035 = vld [vmem:[%s3 + $0x28] sm:$0xf]
    %v1036 = vld [vmem:[%s3 + $0x2c] sm:$0xf]
    %v1037 = vld [vmem:[%s3 + $0x30] sm:$0xf]
    %v1038 = vld [vmem:[%s3 + $0x34] sm:$0xf]
    %v1039 = vld [vmem:[%s3 + $0x38] sm:$0xf]
    %v1040 = vld [vmem:[%s3 + $0x3c] sm:$0xf]
    %v1041 = vld [vmem:[%s3 + $0x40] sm:$0xf]
    %v1042 = vld [vmem:[%s3 + $0x44] sm:$0xf]
    %v1043 = vld [vmem:[%s3 + $0x48] sm:$0xf]
    %v1044 = vld [vmem:[%s3 + $0x4c] sm:$0xf]
    %v1045 = vld [vmem:[%s3 + $0x50] sm:$0xf]
    %v1046 = vld [vmem:[%s3 + $0x54] sm:$0xf]
    %v1047 = vld [vmem:[%s3 + $0x58] sm:$0xf]
    %v1048 = vld [vmem:[%s3 + $0x5c] sm:$0xf]
    %v1049 = vld [vmem:[%s3 + $0x60] sm:$0xf]
    %v1050 = vld [vmem:[%s3 + $0x64] sm:$0xf]
    %v1051 = vld [vmem:[%s3 + $0x68] sm:$0xf]
    %v1052 = vld [vmem:[%s3 + $0x6c] sm:$0xf]
    %v1053 = vld [vmem:[%s3 + $0x70] sm:$0xf]
    %v1054 = vld [vmem:[%s3 + $0x74] sm:$0xf]
    %v1055 = vld [vmem:[%s3 + $0x78] sm:$0xf]
    %v1056 = vld [vmem:[%s3 + $0x7c] sm:$0xf]
    %v1057 = vld [vmem:[%s4] sm:$0x1]
    %v1059 = vlaneseq
    %v1060 = vshrl.u32 %v1059, 7
    %v1061 = vsub.s32 0, %v1060
    %v1062 = vrot.slane %v1057, %v1061
    %v1096 = vunpack.c.l.b16 %v1025
    %v1097 = vunpack.c.l.b16 %v1026
    %v1098 = vunpack.c.l.b16 %v1027
    %v1099 = vunpack.c.l.b16 %v1028
    %v1100 = vunpack.c.l.b16 %v1029
    %v1101 = vunpack.c.l.b16 %v1030
    %v1102 = vunpack.c.l.b16 %v1031
    %v1103 = vunpack.c.l.b16 %v1032
    %v1104 = vunpack.c.l.b16 %v1033
    %v1105 = vunpack.c.l.b16 %v1034
    %v1106 = vunpack.c.l.b16 %v1035
    %v1107 = vunpack.c.l.b16 %v1036
    %v1108 = vunpack.c.l.b16 %v1037
    %v1109 = vunpack.c.l.b16 %v1038
    %v1110 = vunpack.c.l.b16 %v1039
    %v1111 = vunpack.c.l.b16 %v1040
    %v1112 = vunpack.c.l.b16 %v1041
    %v1113 = vunpack.c.l.b16 %v1042
    %v1114 = vunpack.c.l.b16 %v1043
    %v1115 = vunpack.c.l.b16 %v1044
    %v1116 = vunpack.c.l.b16 %v1045
    %v1117 = vunpack.c.l.b16 %v1046
    %v1118 = vunpack.c.l.b16 %v1047
    %v1119 = vunpack.c.l.b16 %v1048
    %v1120 = vunpack.c.l.b16 %v1049
    %v1121 = vunpack.c.l.b16 %v1050
    %v1122 = vunpack.c.l.b16 %v1051
    %v1123 = vunpack.c.l.b16 %v1052
    %v1124 = vunpack.c.l.b16 %v1053
    %v1125 = vunpack.c.l.b16 %v1054
    %v1126 = vunpack.c.l.b16 %v1055
    %v1127 = vunpack.c.l.b16 %v1056
    %v1128 = vpack.c.b16 %v1097, %v1096
    %v1129 = vpack.c.b16 %v1099, %v1098
    %v1130 = vpack.c.b16 %v1101, %v1100
    %v1131 = vpack.c.b16 %v1103, %v1102
    %v1132 = vpack.c.b16 %v1105, %v1104
    %v1133 = vpack.c.b16 %v1107, %v1106
    %v1134 = vpack.c.b16 %v1109, %v1108
    %v1135 = vpack.c.b16 %v1111, %v1110
    %v1136 = vpack.c.b16 %v1113, %v1112
    %v1137 = vpack.c.b16 %v1115, %v1114
    %v1138 = vpack.c.b16 %v1117, %v1116
    %v1139 = vpack.c.b16 %v1119, %v1118
    %v1140 = vpack.c.b16 %v1121, %v1120
    %v1141 = vpack.c.b16 %v1123, %v1122
    %v1142 = vpack.c.b16 %v1125, %v1124
    %v1143 = vpack.c.b16 %v1127, %v1126
    %1160 = vmatprep.subr.bf16.mxu0 0
    %1161 = vmatpush1.bf16.msra.mxu0 %v1135
    %1162 = vmatprep.subr.bf16.mxu0 0
    %1163 = vmatpush1.bf16.msra.mxu0 %v1134
    %1164 = vmatprep.subr.bf16.mxu0 0
    %1165 = vmatpush1.bf16.msra.mxu0 %v1133
    %1166 = vmatprep.subr.bf16.mxu0 0
    %1167 = vmatpush1.bf16.msra.mxu0 %v1132
    %1168 = vmatprep.subr.bf16.mxu0 0
    %1169 = vmatpush1.bf16.msra.mxu0 %v1131
    %1170 = vmatprep.subr.bf16.mxu0 0
    %1171 = vmatpush1.bf16.msra.mxu0 %v1130
    %1172 = vmatprep.subr.bf16.mxu0 0
    %1173 = vmatpush1.bf16.msra.mxu0 %v1129
    %1174 = vmatprep.subr.bf16.mxu0 0
    %1175 = vmatpush1.bf16.msra.mxu0 %v1128
    %1176 = vmatprep.subr.bf16.mxu0 0
    %1177 = vmatpush2.bf16.msra.mxu0 %v1143
    %1178 = vmatprep.subr.bf16.mxu0 0
    %1179 = vmatpush2.bf16.msra.mxu0 %v1142
    %1180 = vmatprep.subr.bf16.mxu0 0
    %1181 = vmatpush2.bf16.msra.mxu0 %v1141
    %1182 = vmatprep.subr.bf16.mxu0 0
    %1183 = vmatpush2.bf16.msra.mxu0 %v1140
    %1184 = vmatprep.subr.bf16.mxu0 0
    %1185 = vmatpush2.bf16.msra.mxu0 %v1139
    %1186 = vmatprep.subr.bf16.mxu0 0
    %1187 = vmatpush2.bf16.msra.mxu0 %v1138
    %1188 = vmatprep.subr.bf16.mxu0 0
    %1189 = vmatpush2.bf16.msra.mxu0 %v1137
    %1190 = vmatprep.subr.bf16.mxu0 0
    %1191 = vmatpush2.bf16.msra.mxu0 %v1136
    %1192 = vmatprep.mubr.bf16.mxu0 %v1024
    %1193 = vmatmul.mubr.bf16.gmra.mxu0 %v1023
    %v1194 = vpop.f32.mrf.mxu0
    %v1195 = vadd.f32 %v1062, %v1194
    %v1196 = vpop.f32.mrf.mxu0
    %v1197 = vpop.f32.mrf.mxu0
    %v1198 = vpop.f32.mrf.mxu0
    %1199 = vdwg.mxu0
    %v1200 = vmax.f32 %v1195, 0.0
    %v1201 = vpack.c.bf16 %v1200, %v1200
    %v1202 = vld [vmem:[%s5] sm:$0xf]
    %v1203 = vld [vmem:[%s5 + $0x4] sm:$0xf]
    %v1204 = vld [vmem:[%s5 + $0x8] sm:$0xf]
    %v1205 = vld [vmem:[%s5 + $0xc] sm:$0xf]
    %v1206 = vld [vmem:[%s5 + $0x10] sm:$0xf]
    %v1207 = vld [vmem:[%s5 + $0x14] sm:$0xf]
    %v1208 = vld [vmem:[%s5 + $0x18] sm:$0xf]
    %v1209 = vld [vmem:[%s5 + $0x1c] sm:$0xf]
    %v1210 = vld [vmem:[%s5 + $0x20] sm:$0xf]
    %v1211 = vld [vmem:[%s5 + $0x24] sm:$0xf]
    %v1212 = vld [vmem:[%s5 + $0x28] sm:$0xf]
    %v1213 = vld [vmem:[%s5 + $0x2c] sm:$0xf]
    %v1214 = vld [vmem:[%s5 + $0x30] sm:$0xf]
    %v1215 = vld [vmem:[%s5 + $0x34] sm:$0xf]
    %v1216 = vld [vmem:[%s5 + $0x38] sm:$0xf]
    %v1217 = vld [vmem:[%s5 + $0x3c] sm:$0xf]
    %v1218 = vld [vmem:[%s6] sm:$0x1]
    %v1220 = vlaneseq
    %v1221 = vshrl.u32 %v1220, 7
    %v1222 = vsub.s32 0, %v1221
    %v1223 = vrot.slane %v1218, %v1222
    %v1241 = vunpack.c.l.b16 %v1202
    %v1242 = vunpack.c.l.b16 %v1203
    %v1243 = vunpack.c.l.b16 %v1204
    %v1244 = vunpack.c.l.b16 %v1205
    %v1245 = vunpack.c.l.b16 %v1206
    %v1246 = vunpack.c.l.b16 %v1207
    %v1247 = vunpack.c.l.b16 %v1208
    %v1248 = vunpack.c.l.b16 %v1209
    %v1249 = vunpack.c.l.b16 %v1210
    %v1250 = vunpack.c.l.b16 %v1211
    %v1251 = vunpack.c.l.b16 %v1212
    %v1252 = vunpack.c.l.b16 %v1213
    %v1253 = vunpack.c.l.b16 %v1214
    %v1254 = vunpack.c.l.b16 %v1215
    %v1255 = vunpack.c.l.b16 %v1216
    %v1256 = vunpack.c.l.b16 %v1217
    %v1257 = vpack.c.b16 %v1242, %v1241
    %v1258 = vpack.c.b16 %v1244, %v1243
    %v1259 = vpack.c.b16 %v1246, %v1245
    %v1260 = vpack.c.b16 %v1248, %v1247
    %v1261 = vpack.c.b16 %v1250, %v1249
    %v1262 = vpack.c.b16 %v1252, %v1251
    %v1263 = vpack.c.b16 %v1254, %v1253
    %v1264 = vpack.c.b16 %v1256, %v1255
    %1273 = vmatprep.subr.bf16.mxu0 0
    %1274 = vmatpush1.bf16.msra.mxu0 %v1264
    %1275 = vmatprep.subr.bf16.mxu0 0
    %1276 = vmatpush1.bf16.msra.mxu0 %v1263
    %1277 = vmatprep.subr.bf16.mxu0 0
    %1278 = vmatpush1.bf16.msra.mxu0 %v1262
    %1279 = vmatprep.subr.bf16.mxu0 0
    %1280 = vmatpush1.bf16.msra.mxu0 %v1261
    %1281 = vmatprep.subr.bf16.mxu0 0
    %1282 = vmatpush1.bf16.msra.mxu0 %v1260
    %1283 = vmatprep.subr.bf16.mxu0 0
    %1284 = vmatpush1.bf16.msra.mxu0 %v1259
    %1285 = vmatprep.subr.bf16.mxu0 0
    %1286 = vmatpush1.bf16.msra.mxu0 %v1258
    %1287 = vmatprep.subr.bf16.mxu0 0
    %1288 = vmatpush1.bf16.msra.mxu0 %v1257
    %1289 = vmatprep.subr.bf16.mxu0 0
    %1290 = vmatpush2.bf16.msra.mxu0 0
    %1291 = vmatprep.subr.bf16.mxu0 0
    %1292 = vmatpush2.bf16.msra.mxu0 0
    %1293 = vmatprep.subr.bf16.mxu0 0
    %1294 = vmatpush2.bf16.msra.mxu0 0
    %1295 = vmatprep.subr.bf16.mxu0 0
    %1296 = vmatpush2.bf16.msra.mxu0 0
    %1297 = vmatprep.subr.bf16.mxu0 0
    %1298 = vmatpush2.bf16.msra.mxu0 0
    %1299 = vmatprep.subr.bf16.mxu0 0
    %1300 = vmatpush2.bf16.msra.mxu0 0
    %1301 = vmatprep.subr.bf16.mxu0 0
    %1302 = vmatpush2.bf16.msra.mxu0 0
    %1303 = vmatprep.subr.bf16.mxu0 0
    %1304 = vmatpush2.bf16.msra.mxu0 0
    %1305 = vmatprep.mubr.bf16.mxu0 0
    %1306 = vmatmul.mubr.bf16.gmra.mxu0 %v1201
    %v1307 = vpop.f32.mrf.mxu0
    %v1308 = vadd.f32 %v1223, %v1307
    %v1309 = vpop.f32.mrf.mxu0
    %v1310 = vpop.f32.mrf.mxu0
    %v1311 = vpop.f32.mrf.mxu0
    %1312 = vdwg.mxu0
    %v1313 = vmax.f32 %v1308, 0.0
    %v1314 = vpack.c.bf16 %v1313, %v1313
    %v1315 = vld [vmem:[#allocation4] sm:$0xf]
    %v1316 = vld [vmem:[#allocation4 + $0x4] sm:$0xf]
    %v1317 = vld [vmem:[#allocation4 + $0x8] sm:$0xf]
    %v1318 = vld [vmem:[#allocation4 + $0xc] sm:$0xf]
    %v1319 = vld [vmem:[#allocation4 + $0x10] sm:$0xf]
    %v1320 = vld [vmem:[#allocation4 + $0x14] sm:$0xf]
    %v1321 = vld [vmem:[#allocation4 + $0x18] sm:$0xf]
    %v1322 = vld [vmem:[#allocation4 + $0x1c] sm:$0xf]
    %v1323 = vld [vmem:[#allocation4 + $0x20] sm:$0xf]
    %v1324 = vld [vmem:[#allocation4 + $0x24] sm:$0xf]
    %v1325 = vld [vmem:[#allocation4 + $0x28] sm:$0xf]
    %v1326 = vld [vmem:[#allocation4 + $0x2c] sm:$0xf]
    %v1327 = vld [vmem:[#allocation4 + $0x30] sm:$0xf]
    %v1328 = vld [vmem:[#allocation4 + $0x34] sm:$0xf]
    %v1329 = vld [vmem:[#allocation4 + $0x38] sm:$0xf]
    %v1330 = vld [vmem:[#allocation4 + $0x3c] sm:$0xf]
    %v1331 = vld [vmem:[%s8] sm:$0x1]
    %v1333 = vlaneseq
    %v1334 = vshrl.u32 %v1333, 7
    %v1335 = vsub.s32 0, %v1334
    %v1336 = vrot.slane %v1331, %v1335
    %v1354 = vunpack.c.l.b16 %v1315
    %v1355 = vunpack.c.l.b16 %v1316
    %v1356 = vunpack.c.l.b16 %v1317
    %v1357 = vunpack.c.l.b16 %v1318
    %v1358 = vunpack.c.l.b16 %v1319
    %v1359 = vunpack.c.l.b16 %v1320
    %v1360 = vunpack.c.l.b16 %v1321
    %v1361 = vunpack.c.l.b16 %v1322
    %v1362 = vunpack.c.l.b16 %v1323
    %v1363 = vunpack.c.l.b16 %v1324
    %v1364 = vunpack.c.l.b16 %v1325
    %v1365 = vunpack.c.l.b16 %v1326
    %v1366 = vunpack.c.l.b16 %v1327
    %v1367 = vunpack.c.l.b16 %v1328
    %v1368 = vunpack.c.l.b16 %v1329
    %v1369 = vunpack.c.l.b16 %v1330
    %v1370 = vpack.c.b16 %v1355, %v1354
    %v1371 = vpack.c.b16 %v1357, %v1356
    %v1372 = vpack.c.b16 %v1359, %v1358
    %v1373 = vpack.c.b16 %v1361, %v1360
    %v1374 = vpack.c.b16 %v1363, %v1362
    %v1375 = vpack.c.b16 %v1365, %v1364
    %v1376 = vpack.c.b16 %v1367, %v1366
    %v1377 = vpack.c.b16 %v1369, %v1368
    %1386 = vmatprep.subr.bf16.mxu0 0
    %1387 = vmatpush1.bf16.msra.mxu0 %v1377
    %1388 = vmatprep.subr.bf16.mxu0 0
    %1389 = vmatpush1.bf16.msra.mxu0 %v1376
    %1390 = vmatprep.subr.bf16.mxu0 0
    %1391 = vmatpush1.bf16.msra.mxu0 %v1375
    %1392 = vmatprep.subr.bf16.mxu0 0
    %1393 = vmatpush1.bf16.msra.mxu0 %v1374
    %1394 = vmatprep.subr.bf16.mxu0 0
    %1395 = vmatpush1.bf16.msra.mxu0 %v1373
    %1396 = vmatprep.subr.bf16.mxu0 0
    %1397 = vmatpush1.bf16.msra.mxu0 %v1372
    %1398 = vmatprep.subr.bf16.mxu0 0
    %1399 = vmatpush1.bf16.msra.mxu0 %v1371
    %1400 = vmatprep.subr.bf16.mxu0 0
    %1401 = vmatpush1.bf16.msra.mxu0 %v1370
    %1402 = vmatprep.subr.bf16.mxu0 0
    %1403 = vmatpush2.bf16.msra.mxu0 0
    %1404 = vmatprep.subr.bf16.mxu0 0
    %1405 = vmatpush2.bf16.msra.mxu0 0
    %1406 = vmatprep.subr.bf16.mxu0 0
    %1407 = vmatpush2.bf16.msra.mxu0 0
    %1408 = vmatprep.subr.bf16.mxu0 0
    %1409 = vmatpush2.bf16.msra.mxu0 0
    %1410 = vmatprep.subr.bf16.mxu0 0
    %1411 = vmatpush2.bf16.msra.mxu0 0
    %1412 = vmatprep.subr.bf16.mxu0 0
    %1413 = vmatpush2.bf16.msra.mxu0 0
    %1414 = vmatprep.subr.bf16.mxu0 0
    %1415 = vmatpush2.bf16.msra.mxu0 0
    %1416 = vmatprep.subr.bf16.mxu0 0
    %1417 = vmatpush2.bf16.msra.mxu0 0
    %1418 = vmatprep.mubr.bf16.mxu0 0
    %1419 = vmatmul.mubr.bf16.gmra.mxu0 %v1314
    %v1420 = vpop.f32.mrf.mxu0
    %v1421 = vadd.f32 %v1336, %v1420
    %v1422 = vpop.f32.mrf.mxu0
    %v1423 = vpop.f32.mrf.mxu0
    %v1424 = vpop.f32.mrf.mxu0
    %1425 = vdwg.mxu0
    %1426 = vst [vmem:[%s9] sm:$0xff] %v1421
    // Predicated region
    $region46: #{_forward.1} parent=1 // pred_check
      _
    $region47: #{_forward.1} parent=1 // pred_check_branch
      %1428 = sbr.rel (0) target = $region49
    $region48: #{_forward.1} parent=1 // pred_region
      _
    $region49: #{_forward.1} parent=1 // pred_fallthru
      _
    // Predicated region
    $region50: #{_forward.1} parent=1 // pred_check
      _
    $region51: #{_forward.1} parent=1 // pred_check_branch
      %1430 = sbr.rel (0) target = $region53
    $region52: #{_forward.1} parent=1 // pred_region
      _
    $region53: #{_forward.1} parent=1 // pred_fallthru
      _
    %1431 = vsyncpa [#allocation3], 1
    %1432 = vsyncpa [#allocation5], 1

</llo_original>
